<compile_context>
chip_gen: v7x
topology: tpu7x:2x2x1
jax: 0.10.0
libtpu: 0.0.40
codegen_flags: <defaults>
</compile_context>

<pallas_src>
import functools

import jax
import jax.numpy as jnp
import numpy as np
from jax.experimental import pallas as pl
from jax.experimental.pallas import tpu as pltpu


# ----------------------------------------------------------------------------
# Kernel A: per-image MaxPool2d(2) + pad + 3x3 conv (9 accumulated taps) + partial BN stats.
# ----------------------------------------------------------------------------
def _pool_pad_conv_kernel(x_ref, whi_ref, wlo_ref, y_ref, st_ref, pad_ref, *,
                          Hh, Wh, Cin, Cout, circular):
    """One grid step == one image.

    x_ref   : (1, 2*Hh, Wh, 2*Cin)  pre-pool NHWC input, W folded as (Wh, [w-even|w-odd] x Cin)
    whi_ref : (9, Cout, Cin) bf16   conv weight (hi part), tap-major (kh*3+kw)
    wlo_ref : (9, Cout, Cin) bf16   conv weight (lo part)
    y_ref   : (1, Cout, Hh*Wh)      conv output for this image (lane axis = HW)
    st_ref  : (1, Cout, 2)          [:, :, 0] = sum(y), [:, :, 1] = sum(y^2) per channel
    pad_ref : (Hh+2, Wh+2, Cin)     VMEM scratch: padded pooled image (per-step, per-core)
    """
    HW = Hh * Wh

    # ---- MaxPool2d(2): max over the W pair (lane halves), then the H pair (free
    #      major-dim reshape).
    r = x_ref[0]                                         # (2*Hh, Wh, 2*Cin)
    mw = jnp.maximum(r[..., :Cin], r[..., Cin:])         # (2*Hh, Wh, Cin)
    mh = mw.reshape(Hh, 2, Wh, Cin)
    pooled = jnp.maximum(mh[:, 0], mh[:, 1])             # (Hh, Wh, Cin)

    # ---- padding: zero only the H halo rows (covers corners); interior and the
    #      W halo are fully (re)written every step, so no full-scratch memset.
    zrow = jnp.zeros((Wh + 2, Cin), dtype=pad_ref.dtype)
    pad_ref[0] = zrow
    pad_ref[Hh + 1] = zrow
    pad_ref[pl.ds(1, Hh), pl.ds(1, Wh), :] = pooled
    if circular:
        pad_ref[pl.ds(1, Hh), pl.ds(0, 1), :] = pooled[:, Wh - 1:Wh, :]
        pad_ref[pl.ds(1, Hh), pl.ds(Wh + 1, 1), :] = pooled[:, 0:1, :]
    else:
        zcol = jnp.zeros((Hh, 1, Cin), dtype=pad_ref.dtype)
        pad_ref[pl.ds(1, Hh), pl.ds(0, 1), :] = zcol
        pad_ref[pl.ds(1, Hh), pl.ds(Wh + 1, 1), :] = zcol

    # ---- 3x3 conv as 9 accumulated NT dot_generals: acc (Cout, HW) stays f32 in
    #      registers; no im2col patch, no concatenates.
    dn = (((1,), (1,)), ((), ()))                        # contract last dim of both

    def dot_nt(a, b):
        return jax.lax.dot_general(a, b, dn, preferred_element_type=jnp.float32)

    acc = jnp.zeros((Cout, HW), jnp.float32)
    for kh in range(3):
        for kw in range(3):
            k = kh * 3 + kw
            tap = pad_ref[pl.ds(kh, Hh), pl.ds(kw, Wh), :]       # (Hh, Wh, Cin)
            t = tap.reshape(HW, Cin)                             # free (major-dim merge)
            t_hi = t.astype(jnp.bfloat16)
            t_lo = (t - t_hi.astype(jnp.float32)).astype(jnp.bfloat16)
            wh = whi_ref[k]                                      # (Cout, Cin) bf16
            wl = wlo_ref[k]
            # bf16x3 split (~f32 accuracy); w_lo*t_lo deliberately dropped (~2^-16).
            acc = acc + dot_nt(wh, t_hi) + dot_nt(wh, t_lo) + dot_nt(wl, t_hi)

    # NOTE: conv bias intentionally omitted -- training-mode BatchNorm's batch mean
    # cancels it exactly, so the forward output is unchanged.

    # ---- one lane-dense full-block store + per-image partial BN statistics.
    y_ref[0] = acc
    st_ref[0, :, pl.ds(0, 1)] = jnp.sum(acc, axis=1, keepdims=True)
    st_ref[0, :, pl.ds(1, 1)] = jnp.sum(acc * acc, axis=1, keepdims=True)


# ----------------------------------------------------------------------------
# Kernel B: apply BatchNorm scale/shift + LeakyReLU (per image).
# ----------------------------------------------------------------------------
def _bn_lrelu_kernel(y_ref, s_ref, b_ref, o_ref, *, neg_slope):
    """y_ref/o_ref: (1, Cout, HW); s_ref/b_ref: (Cout, 1)."""
    z = y_ref[0] * s_ref[...] + b_ref[...]
    o_ref[0] = jnp.where(z >= 0, z, neg_slope * z)


# ----------------------------------------------------------------------------
# Wrapper (public interface is NCHW, like the PyTorch module).
# ----------------------------------------------------------------------------
def _vreg_padded_bytes(shape, itemsize):
    """Rough VMEM footprint of an array padded to (8, 128) tiles."""
    if len(shape) >= 2:
        lead = 1
        for d in shape[:-2]:
            lead *= d
        sub = -(-shape[-2] // 8) * 8
        lane = -(-shape[-1] // 128) * 128
        return lead * sub * lane * itemsize
    return -(-shape[-1] // 128) * 128 * itemsize


def down_cbr_forward(x_nchw, params, circular_padding=True, eps=1e-5, neg_slope=0.01):
    """down_CBR forward on TPU via two Pallas kernels (conv+stats, BN+LeakyReLU).

    x_nchw: (N, Cin, H, W) float32, H and W even.
    params: {"w": (Cout, Cin, 3, 3), "b": (Cout,), "gamma": (Cout,), "beta": (Cout,)}
            ("b" accepted for interface parity; cancelled by training-mode BN.)
    returns: (N, Cout, H//2, W//2) float32.
    """
    w = params["w"]
    gamma, beta = params["gamma"], params["beta"]

    N, Cin, H, W = x_nchw.shape
    Cout = w.shape[0]
    assert H % 2 == 0 and W % 2 == 0
    Hh, Wh = H // 2, W // 2
    HW = Hh * Wh

    # TODO(synk): verify with xprof that this relayout fuses (does not round-trip HBM);
    # if it does, move the pooling-friendly relayout into kernel A.
    x4 = jnp.transpose(x_nchw, (0, 2, 3, 1)).reshape(N, H, Wh, 2 * Cin).astype(jnp.float32)

    # Conv weight, tap-major (kh, kw) -> (9, Cout, Cin), pre-split into bf16 hi/lo.
    w_f = jnp.transpose(w, (2, 3, 0, 1)).reshape(9, Cout, Cin).astype(jnp.float32)
    w_hi = w_f.astype(jnp.bfloat16)
    w_lo = (w_f - w_hi.astype(jnp.float32)).astype(jnp.bfloat16)

    # --- VMEM budget sized from the actual (double-buffered) blocks; stay well
    #     under the v7x 64 MiB physical ceiling.
    est = (2 * (_vreg_padded_bytes((1, H, Wh, 2 * Cin), 4)
                + 2 * _vreg_padded_bytes((9, Cout, Cin), 2)
                + _vreg_padded_bytes((1, Cout, HW), 4)
                + _vreg_padded_bytes((1, Cout, 2), 4))
           + _vreg_padded_bytes((Hh + 2, Wh + 2, Cin), 4))
    vmem_limit = int(min(60 * 2**20, max(16 * 2**20, 4 * est)))
    cparams = pltpu.CompilerParams(dimension_semantics=("parallel",),
                                   vmem_limit_bytes=vmem_limit)

    # ---------------- pass 1: pool + pad + conv + partial BN stats --------------
    kern_a = functools.partial(
        _pool_pad_conv_kernel,
        Hh=Hh, Wh=Wh, Cin=Cin, Cout=Cout, circular=bool(circular_padding))

    y, stats = pl.pallas_call(
        kern_a,
        out_shape=(jax.ShapeDtypeStruct((N, Cout, HW), jnp.float32),
                   jax.ShapeDtypeStruct((N, Cout, 2), jnp.float32)),
        grid=(N,),
        in_specs=[
            pl.BlockSpec((1, H, Wh, 2 * Cin), lambda n: (n, 0, 0, 0)),
            pl.BlockSpec((9, Cout, Cin), lambda n: (0, 0, 0)),
            pl.BlockSpec((9, Cout, Cin), lambda n: (0, 0, 0)),
        ],
        out_specs=(
            pl.BlockSpec((1, Cout, HW), lambda n: (n, 0, 0)),
            pl.BlockSpec((1, Cout, 2), lambda n: (n, 0, 0)),
        ),
        scratch_shapes=[pltpu.VMEM((Hh + 2, Wh + 2, Cin), jnp.float32)],
        compiler_params=cparams,
    )(x4, w_hi, w_lo)

    # ---------------- finalize BN statistics (tiny O(Cout) XLA work) ------------
    cnt = float(N * HW)
    ssum = jnp.sum(stats[:, :, 0], axis=0)
    ssq = jnp.sum(stats[:, :, 1], axis=0)
    mean = ssum / cnt
    # Biased variance (training-mode BN).  E[y^2]-E[y]^2 is cancellation-prone for
    # |mean| >> std; fine at 1e-3 here (conv outputs are ~zero-mean).
    var = jnp.maximum(ssq / cnt - mean * mean, 0.0)
    scale = gamma.astype(jnp.float32) * jax.lax.rsqrt(var + float(eps))
    shift = beta.astype(jnp.float32) - mean * scale

    # ---------------- pass 2: apply BN scale/shift + LeakyReLU ------------------
    kern_b = functools.partial(_bn_lrelu_kernel, neg_slope=float(neg_slope))
    out = pl.pallas_call(
        kern_b,
        out_shape=jax.ShapeDtypeStruct((N, Cout, HW), jnp.float32),
        grid=(N,),
        in_specs=[
            pl.BlockSpec((1, Cout, HW), lambda n: (n, 0, 0)),
            pl.BlockSpec((Cout, 1), lambda n: (0, 0)),
            pl.BlockSpec((Cout, 1), lambda n: (0, 0)),
        ],
        out_specs=pl.BlockSpec((1, Cout, HW), lambda n: (n, 0, 0)),
        compiler_params=cparams,
    )(y, scale.reshape(Cout, 1), shift.reshape(Cout, 1))

    # (N, Cout, Hh*Wh) -> (N, Cout, Hh, Wh): free, contiguous NCHW reshape.
    return out.reshape(N, Cout, Hh, Wh)


# ----------------------------------------------------------------------------
# Pure-JAX reference (mirrors the PyTorch forward) for verification.
# ----------------------------------------------------------------------------
def reference_forward(x_nchw, params, circular_padding=True, eps=1e-5, neg_slope=0.01):
    w, b = params["w"], params["b"]
    gamma, beta = params["gamma"], params["beta"]
    N, C, H, W = x_nchw.shape
    x = x_nchw.reshape(N, C, H // 2, 2, W // 2, 2).max(axis=(3, 5))       # MaxPool2d(2)
    if circular_padding:
        x = jnp.concatenate([x[..., -1:], x, x[..., :1]], axis=3)         # F.pad circular (W)
        pad_w = (0, 0)
    else:
        pad_w = (1, 1)
    y = jax.lax.conv_general_dilated(
        x, w, window_strides=(1, 1), padding=((1, 1), pad_w),
        dimension_numbers=("NCHW", "OIHW", "NCHW"),
        precision=jax.lax.Precision.HIGHEST,
    ) + b.reshape(1, -1, 1, 1)
    mean = y.mean(axis=(0, 2, 3), keepdims=True)
    var = y.var(axis=(0, 2, 3), keepdims=True)                            # biased
    yn = gamma.reshape(1, -1, 1, 1) * (y - mean) / jnp.sqrt(var + eps) \
        + beta.reshape(1, -1, 1, 1)
    return jnp.where(yn >= 0, yn, neg_slope * yn)                         # LeakyReLU(0.01)


if __name__ == "__main__":
    key = jax.random.PRNGKey(0)
    k1, k2, k3, k4, k5 = jax.random.split(key, 5)

    N, Cin, H, W = 2, 4, 16, 16
    Cout = 8

    x = jax.random.normal(k1, (N, Cin, H, W), dtype=jnp.float32)
    params = {
        "w": 0.2 * jax.random.normal(k2, (Cout, Cin, 3, 3), dtype=jnp.float32),
        "b": 0.1 * jax.random.normal(k3, (Cout,), dtype=jnp.float32),
        "gamma": 1.0 + 0.1 * jax.random.normal(k4, (Cout,), dtype=jnp.float32),
        "beta": 0.1 * jax.random.normal(k5, (Cout,), dtype=jnp.float32),
    }

    fwd = jax.jit(down_cbr_forward, static_argnames=("circular_padding",))

    for circ in (True, False):
        out = jax.block_until_ready(fwd(x, params, circular_padding=circ))
        ref = jax.block_until_ready(reference_forward(x, params, circular_padding=circ))
        assert out.shape == (N, Cout, H // 2, W // 2), out.shape
        np.testing.assert_allclose(np.asarray(out), np.asarray(ref), rtol=1e-3, atol=1e-3)

    print("KERNEL_OK")
</pallas_src>

<mosaic_0001>
module attributes {stable_mosaic.version = 11 : i64} {
  func.func @_pool_pad_conv_kernel(%arg0: i32, %arg1: memref<1x16x8x8xf32, #tpu.memory_space<vmem>>, %arg2: memref<9x8x4xbf16, #tpu.memory_space<vmem>>, %arg3: memref<9x8x4xbf16, #tpu.memory_space<vmem>>, %arg4: memref<1x8x64xf32, #tpu.memory_space<vmem>>, %arg5: memref<1x8x2xf32, #tpu.memory_space<vmem>>, %arg6: memref<10x10x4xf32, #tpu.memory_space<vmem>>) attributes {dimension_semantics = [#tpu.dimension_semantics<parallel>], iteration_bounds = array<i64: 2>, scalar_prefetch = 0 : i64, scratch_operands = 1 : i64, tpu.core_type = #tpu.core_type<tc>, window_params = [{transform_indices = @transform_0, window_bounds = array<i64: 1, 16, 8, 8>}, {pipeline_mode = #tpu.pipeline_mode<synchronous>, transform_indices = @transform_1, window_bounds = array<i64: 9, 8, 4>}, {pipeline_mode = #tpu.pipeline_mode<synchronous>, transform_indices = @transform_2, window_bounds = array<i64: 9, 8, 4>}, {transform_indices = @transform_3, window_bounds = array<i64: 1, 8, 64>}, {transform_indices = @transform_4, window_bounds = array<i64: 1, 8, 2>}]} {
    %c0 = arith.constant 0 : index
    %c0_0 = arith.constant 0 : index
    %c0_1 = arith.constant 0 : index
    %c0_2 = arith.constant 0 : index
    %0 = vector.load %arg1[%c0, %c0_0, %c0_1, %c0_2] : memref<1x16x8x8xf32, #tpu.memory_space<vmem>>, vector<1x16x8x8xf32>
    %1 = vector.shape_cast %0 : vector<1x16x8x8xf32> to vector<16x8x8xf32>
    %2 = vector.extract_strided_slice %1 {offsets = [0, 0, 0], sizes = [16, 8, 4], strides = [1, 1, 1]} : vector<16x8x8xf32> to vector<16x8x4xf32>
    %3 = vector.extract_strided_slice %1 {offsets = [0, 0, 4], sizes = [16, 8, 4], strides = [1, 1, 1]} : vector<16x8x8xf32> to vector<16x8x4xf32>
    %4 = arith.maximumf %2, %3 : vector<16x8x4xf32>
    %5 = vector.shape_cast %4 : vector<16x8x4xf32> to vector<8x2x8x4xf32>
    %6 = vector.extract_strided_slice %5 {offsets = [0, 0, 0, 0], sizes = [8, 1, 8, 4], strides = [1, 1, 1, 1]} : vector<8x2x8x4xf32> to vector<8x1x8x4xf32>
    %7 = vector.shape_cast %6 : vector<8x1x8x4xf32> to vector<8x8x4xf32>
    %8 = vector.extract_strided_slice %5 {offsets = [0, 1, 0, 0], sizes = [8, 1, 8, 4], strides = [1, 1, 1, 1]} : vector<8x2x8x4xf32> to vector<8x1x8x4xf32>
    %9 = vector.shape_cast %8 : vector<8x1x8x4xf32> to vector<8x8x4xf32>
    %10 = arith.maximumf %7, %9 : vector<8x8x4xf32>
    %cst = arith.constant 0.000000e+00 : f32
    %11 = vector.broadcast %cst : f32 to vector<10x4xf32>
    %c0_3 = arith.constant 0 : index
    %c0_4 = arith.constant 0 : index
    %c0_5 = arith.constant 0 : index
    %12 = vector.load %arg6[%c0_3, %c0_4, %c0_5] : memref<10x10x4xf32, #tpu.memory_space<vmem>>, vector<1x10x4xf32>
    %13 = vector.shape_cast %12 : vector<1x10x4xf32> to vector<10x4xf32>
    %14 = vector.shape_cast %11 : vector<10x4xf32> to vector<1x10x4xf32>
    tpu.vector_store %arg6[%c0_3, %c0_4, %c0_5], %14 {strides = array<i32>} : memref<10x10x4xf32, #tpu.memory_space<vmem>>, vector<1x10x4xf32>,
    %c9 = arith.constant 9 : index
    %c0_6 = arith.constant 0 : index
    %c0_7 = arith.constant 0 : index
    %15 = vector.load %arg6[%c9, %c0_6, %c0_7] : memref<10x10x4xf32, #tpu.memory_space<vmem>>, vector<1x10x4xf32>
    %16 = vector.shape_cast %15 : vector<1x10x4xf32> to vector<10x4xf32>
    %17 = vector.shape_cast %11 : vector<10x4xf32> to vector<1x10x4xf32>
    tpu.vector_store %arg6[%c9, %c0_6, %c0_7], %17 {strides = array<i32>} : memref<10x10x4xf32, #tpu.memory_space<vmem>>, vector<1x10x4xf32>,
    %c1 = arith.constant 1 : index
    %c1_8 = arith.constant 1 : index
    %c0_9 = arith.constant 0 : index
    %18 = vector.load %arg6[%c1, %c1_8, %c0_9] : memref<10x10x4xf32, #tpu.memory_space<vmem>>, vector<8x8x4xf32>
    tpu.vector_store %arg6[%c1, %c1_8, %c0_9], %10 {strides = array<i32>} : memref<10x10x4xf32, #tpu.memory_space<vmem>>, vector<8x8x4xf32>,
    %19 = vector.extract_strided_slice %10 {offsets = [0, 7, 0], sizes = [8, 1, 4], strides = [1, 1, 1]} : vector<8x8x4xf32> to vector<8x1x4xf32>
    %c1_10 = arith.constant 1 : index
    %c0_11 = arith.constant 0 : index
    %c0_12 = arith.constant 0 : index
    %20 = vector.load %arg6[%c1_10, %c0_11, %c0_12] : memref<10x10x4xf32, #tpu.memory_space<vmem>>, vector<8x1x4xf32>
    tpu.vector_store %arg6[%c1_10, %c0_11, %c0_12], %19 {strides = array<i32>} : memref<10x10x4xf32, #tpu.memory_space<vmem>>, vector<8x1x4xf32>,
    %21 = vector.extract_strided_slice %10 {offsets = [0, 0, 0], sizes = [8, 1, 4], strides = [1, 1, 1]} : vector<8x8x4xf32> to vector<8x1x4xf32>
    %c1_13 = arith.constant 1 : index
    %c9_14 = arith.constant 9 : index
    %c0_15 = arith.constant 0 : index
    %22 = vector.load %arg6[%c1_13, %c9_14, %c0_15] : memref<10x10x4xf32, #tpu.memory_space<vmem>>, vector<8x1x4xf32>
    tpu.vector_store %arg6[%c1_13, %c9_14, %c0_15], %21 {strides = array<i32>} : memref<10x10x4xf32, #tpu.memory_space<vmem>>, vector<8x1x4xf32>,
    %cst_16 = arith.constant 0.000000e+00 : f32
    %23 = vector.broadcast %cst_16 : f32 to vector<8x64xf32>
    %c0_17 = arith.constant 0 : index
    %c0_18 = arith.constant 0 : index
    %c0_19 = arith.constant 0 : index
    %24 = vector.load %arg6[%c0_17, %c0_18, %c0_19] : memref<10x10x4xf32, #tpu.memory_space<vmem>>, vector<8x8x4xf32>
    %25 = vector.shape_cast %24 : vector<8x8x4xf32> to vector<64x4xf32>
    %26 = arith.truncf %25 : vector<64x4xf32> to vector<64x4xbf16>
    %27 = arith.extf %26 : vector<64x4xbf16> to vector<64x4xf32>
    %28 = arith.subf %25, %27 : vector<64x4xf32>
    %29 = arith.truncf %28 : vector<64x4xf32> to vector<64x4xbf16>
    %c0_20 = arith.constant 0 : index
    %c0_21 = arith.constant 0 : index
    %c0_22 = arith.constant 0 : index
    %30 = vector.load %arg2[%c0_20, %c0_21, %c0_22] : memref<9x8x4xbf16, #tpu.memory_space<vmem>>, vector<1x8x4xbf16>
    %31 = vector.shape_cast %30 : vector<1x8x4xbf16> to vector<8x4xbf16>
    %c0_23 = arith.constant 0 : index
    %c0_24 = arith.constant 0 : index
    %c0_25 = arith.constant 0 : index
    %32 = vector.load %arg3[%c0_23, %c0_24, %c0_25] : memref<9x8x4xbf16, #tpu.memory_space<vmem>>, vector<1x8x4xbf16>
    %33 = vector.shape_cast %32 : vector<1x8x4xbf16> to vector<8x4xbf16>
    %cst_26 = arith.constant dense<0.000000e+00> : vector<8x64xf32>
    %34 = tpu.matmul %31, %26, %cst_26 {dimension_numbers = #tpu.dot_dimension_numbers<[1], [1], [0], [0], [0, 0, 1, 0], [], []>} : vector<8x4xbf16>, vector<64x4xbf16>, vector<8x64xf32> -> vector<8x64xf32>
    %35 = arith.addf %23, %34 : vector<8x64xf32>
    %cst_27 = arith.constant dense<0.000000e+00> : vector<8x64xf32>
    %36 = tpu.matmul %31, %29, %cst_27 {dimension_numbers = #tpu.dot_dimension_numbers<[1], [1], [0], [0], [0, 0, 1, 0], [], []>} : vector<8x4xbf16>, vector<64x4xbf16>, vector<8x64xf32> -> vector<8x64xf32>
    %37 = arith.addf %35, %36 : vector<8x64xf32>
    %cst_28 = arith.constant dense<0.000000e+00> : vector<8x64xf32>
    %38 = tpu.matmul %33, %26, %cst_28 {dimension_numbers = #tpu.dot_dimension_numbers<[1], [1], [0], [0], [0, 0, 1, 0], [], []>} : vector<8x4xbf16>, vector<64x4xbf16>, vector<8x64xf32> -> vector<8x64xf32>
    %39 = arith.addf %37, %38 : vector<8x64xf32>
    %c0_29 = arith.constant 0 : index
    %c1_30 = arith.constant 1 : index
    %c0_31 = arith.constant 0 : index
    %40 = vector.load %arg6[%c0_29, %c1_30, %c0_31] : memref<10x10x4xf32, #tpu.memory_space<vmem>>, vector<8x8x4xf32>
    %41 = vector.shape_cast %40 : vector<8x8x4xf32> to vector<64x4xf32>
    %42 = arith.truncf %41 : vector<64x4xf32> to vector<64x4xbf16>
    %43 = arith.extf %42 : vector<64x4xbf16> to vector<64x4xf32>
    %44 = arith.subf %41, %43 : vector<64x4xf32>
    %45 = arith.truncf %44 : vector<64x4xf32> to vector<64x4xbf16>
    %c1_32 = arith.constant 1 : index
    %c0_33 = arith.constant 0 : index
    %c0_34 = arith.constant 0 : index
    %46 = vector.load %arg2[%c1_32, %c0_33, %c0_34] : memref<9x8x4xbf16, #tpu.memory_space<vmem>>, vector<1x8x4xbf16>
    %47 = vector.shape_cast %46 : vector<1x8x4xbf16> to vector<8x4xbf16>
    %c1_35 = arith.constant 1 : index
    %c0_36 = arith.constant 0 : index
    %c0_37 = arith.constant 0 : index
    %48 = vector.load %arg3[%c1_35, %c0_36, %c0_37] : memref<9x8x4xbf16, #tpu.memory_space<vmem>>, vector<1x8x4xbf16>
    %49 = vector.shape_cast %48 : vector<1x8x4xbf16> to vector<8x4xbf16>
    %cst_38 = arith.constant dense<0.000000e+00> : vector<8x64xf32>
    %50 = tpu.matmul %47, %42, %cst_38 {dimension_numbers = #tpu.dot_dimension_numbers<[1], [1], [0], [0], [0, 0, 1, 0], [], []>} : vector<8x4xbf16>, vector<64x4xbf16>, vector<8x64xf32> -> vector<8x64xf32>
    %51 = arith.addf %39, %50 : vector<8x64xf32>
    %cst_39 = arith.constant dense<0.000000e+00> : vector<8x64xf32>
    %52 = tpu.matmul %47, %45, %cst_39 {dimension_numbers = #tpu.dot_dimension_numbers<[1], [1], [0], [0], [0, 0, 1, 0], [], []>} : vector<8x4xbf16>, vector<64x4xbf16>, vector<8x64xf32> -> vector<8x64xf32>
    %53 = arith.addf %51, %52 : vector<8x64xf32>
    %cst_40 = arith.constant dense<0.000000e+00> : vector<8x64xf32>
    %54 = tpu.matmul %49, %42, %cst_40 {dimension_numbers = #tpu.dot_dimension_numbers<[1], [1], [0], [0], [0, 0, 1, 0], [], []>} : vector<8x4xbf16>, vector<64x4xbf16>, vector<8x64xf32> -> vector<8x64xf32>
    %55 = arith.addf %53, %54 : vector<8x64xf32>
    %c0_41 = arith.constant 0 : index
    %c2 = arith.constant 2 : index
    %c0_42 = arith.constant 0 : index
    %56 = vector.load %arg6[%c0_41, %c2, %c0_42] : memref<10x10x4xf32, #tpu.memory_space<vmem>>, vector<8x8x4xf32>
    %57 = vector.shape_cast %56 : vector<8x8x4xf32> to vector<64x4xf32>
    %58 = arith.truncf %57 : vector<64x4xf32> to vector<64x4xbf16>
    %59 = arith.extf %58 : vector<64x4xbf16> to vector<64x4xf32>
    %60 = arith.subf %57, %59 : vector<64x4xf32>
    %61 = arith.truncf %60 : vector<64x4xf32> to vector<64x4xbf16>
    %c2_43 = arith.constant 2 : index
    %c0_44 = arith.constant 0 : index
    %c0_45 = arith.constant 0 : index
    %62 = vector.load %arg2[%c2_43, %c0_44, %c0_45] : memref<9x8x4xbf16, #tpu.memory_space<vmem>>, vector<1x8x4xbf16>
    %63 = vector.shape_cast %62 : vector<1x8x4xbf16> to vector<8x4xbf16>
    %c2_46 = arith.constant 2 : index
    %c0_47 = arith.constant 0 : index
    %c0_48 = arith.constant 0 : index
    %64 = vector.load %arg3[%c2_46, %c0_47, %c0_48] : memref<9x8x4xbf16, #tpu.memory_space<vmem>>, vector<1x8x4xbf16>
    %65 = vector.shape_cast %64 : vector<1x8x4xbf16> to vector<8x4xbf16>
    %cst_49 = arith.constant dense<0.000000e+00> : vector<8x64xf32>
    %66 = tpu.matmul %63, %58, %cst_49 {dimension_numbers = #tpu.dot_dimension_numbers<[1], [1], [0], [0], [0, 0, 1, 0], [], []>} : vector<8x4xbf16>, vector<64x4xbf16>, vector<8x64xf32> -> vector<8x64xf32>
    %67 = arith.addf %55, %66 : vector<8x64xf32>
    %cst_50 = arith.constant dense<0.000000e+00> : vector<8x64xf32>
    %68 = tpu.matmul %63, %61, %cst_50 {dimension_numbers = #tpu.dot_dimension_numbers<[1], [1], [0], [0], [0, 0, 1, 0], [], []>} : vector<8x4xbf16>, vector<64x4xbf16>, vector<8x64xf32> -> vector<8x64xf32>
    %69 = arith.addf %67, %68 : vector<8x64xf32>
    %cst_51 = arith.constant dense<0.000000e+00> : vector<8x64xf32>
    %70 = tpu.matmul %65, %58, %cst_51 {dimension_numbers = #tpu.dot_dimension_numbers<[1], [1], [0], [0], [0, 0, 1, 0], [], []>} : vector<8x4xbf16>, vector<64x4xbf16>, vector<8x64xf32> -> vector<8x64xf32>
    %71 = arith.addf %69, %70 : vector<8x64xf32>
    %c1_52 = arith.constant 1 : index
    %c0_53 = arith.constant 0 : index
    %c0_54 = arith.constant 0 : index
    %72 = vector.load %arg6[%c1_52, %c0_53, %c0_54] : memref<10x10x4xf32, #tpu.memory_space<vmem>>, vector<8x8x4xf32>
    %73 = vector.shape_cast %72 : vector<8x8x4xf32> to vector<64x4xf32>
    %74 = arith.truncf %73 : vector<64x4xf32> to vector<64x4xbf16>
    %75 = arith.extf %74 : vector<64x4xbf16> to vector<64x4xf32>
    %76 = arith.subf %73, %75 : vector<64x4xf32>
    %77 = arith.truncf %76 : vector<64x4xf32> to vector<64x4xbf16>
    %c3 = arith.constant 3 : index
    %c0_55 = arith.constant 0 : index
    %c0_56 = arith.constant 0 : index
    %78 = vector.load %arg2[%c3, %c0_55, %c0_56] : memref<9x8x4xbf16, #tpu.memory_space<vmem>>, vector<1x8x4xbf16>
    %79 = vector.shape_cast %78 : vector<1x8x4xbf16> to vector<8x4xbf16>
    %c3_57 = arith.constant 3 : index
    %c0_58 = arith.constant 0 : index
    %c0_59 = arith.constant 0 : index
    %80 = vector.load %arg3[%c3_57, %c0_58, %c0_59] : memref<9x8x4xbf16, #tpu.memory_space<vmem>>, vector<1x8x4xbf16>
    %81 = vector.shape_cast %80 : vector<1x8x4xbf16> to vector<8x4xbf16>
    %cst_60 = arith.constant dense<0.000000e+00> : vector<8x64xf32>
    %82 = tpu.matmul %79, %74, %cst_60 {dimension_numbers = #tpu.dot_dimension_numbers<[1], [1], [0], [0], [0, 0, 1, 0], [], []>} : vector<8x4xbf16>, vector<64x4xbf16>, vector<8x64xf32> -> vector<8x64xf32>
    %83 = arith.addf %71, %82 : vector<8x64xf32>
    %cst_61 = arith.constant dense<0.000000e+00> : vector<8x64xf32>
    %84 = tpu.matmul %79, %77, %cst_61 {dimension_numbers = #tpu.dot_dimension_numbers<[1], [1], [0], [0], [0, 0, 1, 0], [], []>} : vector<8x4xbf16>, vector<64x4xbf16>, vector<8x64xf32> -> vector<8x64xf32>
    %85 = arith.addf %83, %84 : vector<8x64xf32>
    %cst_62 = arith.constant dense<0.000000e+00> : vector<8x64xf32>
    %86 = tpu.matmul %81, %74, %cst_62 {dimension_numbers = #tpu.dot_dimension_numbers<[1], [1], [0], [0], [0, 0, 1, 0], [], []>} : vector<8x4xbf16>, vector<64x4xbf16>, vector<8x64xf32> -> vector<8x64xf32>
    %87 = arith.addf %85, %86 : vector<8x64xf32>
    %c1_63 = arith.constant 1 : index
    %c1_64 = arith.constant 1 : index
    %c0_65 = arith.constant 0 : index
    %88 = vector.load %arg6[%c1_63, %c1_64, %c0_65] : memref<10x10x4xf32, #tpu.memory_space<vmem>>, vector<8x8x4xf32>
    %89 = vector.shape_cast %88 : vector<8x8x4xf32> to vector<64x4xf32>
    %90 = arith.truncf %89 : vector<64x4xf32> to vector<64x4xbf16>
    %91 = arith.extf %90 : vector<64x4xbf16> to vector<64x4xf32>
    %92 = arith.subf %89, %91 : vector<64x4xf32>
    %93 = arith.truncf %92 : vector<64x4xf32> to vector<64x4xbf16>
    %c4 = arith.constant 4 : index
    %c0_66 = arith.constant 0 : index
    %c0_67 = arith.constant 0 : index
    %94 = vector.load %arg2[%c4, %c0_66, %c0_67] : memref<9x8x4xbf16, #tpu.memory_space<vmem>>, vector<1x8x4xbf16>
    %95 = vector.shape_cast %94 : vector<1x8x4xbf16> to vector<8x4xbf16>
    %c4_68 = arith.constant 4 : index
    %c0_69 = arith.constant 0 : index
    %c0_70 = arith.constant 0 : index
    %96 = vector.load %arg3[%c4_68, %c0_69, %c0_70] : memref<9x8x4xbf16, #tpu.memory_space<vmem>>, vector<1x8x4xbf16>
    %97 = vector.shape_cast %96 : vector<1x8x4xbf16> to vector<8x4xbf16>
    %cst_71 = arith.constant dense<0.000000e+00> : vector<8x64xf32>
    %98 = tpu.matmul %95, %90, %cst_71 {dimension_numbers = #tpu.dot_dimension_numbers<[1], [1], [0], [0], [0, 0, 1, 0], [], []>} : vector<8x4xbf16>, vector<64x4xbf16>, vector<8x64xf32> -> vector<8x64xf32>
    %99 = arith.addf %87, %98 : vector<8x64xf32>
    %cst_72 = arith.constant dense<0.000000e+00> : vector<8x64xf32>
    %100 = tpu.matmul %95, %93, %cst_72 {dimension_numbers = #tpu.dot_dimension_numbers<[1], [1], [0], [0], [0, 0, 1, 0], [], []>} : vector<8x4xbf16>, vector<64x4xbf16>, vector<8x64xf32> -> vector<8x64xf32>
    %101 = arith.addf %99, %100 : vector<8x64xf32>
    %cst_73 = arith.constant dense<0.000000e+00> : vector<8x64xf32>
    %102 = tpu.matmul %97, %90, %cst_73 {dimension_numbers = #tpu.dot_dimension_numbers<[1], [1], [0], [0], [0, 0, 1, 0], [], []>} : vector<8x4xbf16>, vector<64x4xbf16>, vector<8x64xf32> -> vector<8x64xf32>
    %103 = arith.addf %101, %102 : vector<8x64xf32>
    %c1_74 = arith.constant 1 : index
    %c2_75 = arith.constant 2 : index
    %c0_76 = arith.constant 0 : index
    %104 = vector.load %arg6[%c1_74, %c2_75, %c0_76] : memref<10x10x4xf32, #tpu.memory_space<vmem>>, vector<8x8x4xf32>
    %105 = vector.shape_cast %104 : vector<8x8x4xf32> to vector<64x4xf32>
    %106 = arith.truncf %105 : vector<64x4xf32> to vector<64x4xbf16>
    %107 = arith.extf %106 : vector<64x4xbf16> to vector<64x4xf32>
    %108 = arith.subf %105, %107 : vector<64x4xf32>
    %109 = arith.truncf %108 : vector<64x4xf32> to vector<64x4xbf16>
    %c5 = arith.constant 5 : index
    %c0_77 = arith.constant 0 : index
    %c0_78 = arith.constant 0 : index
    %110 = vector.load %arg2[%c5, %c0_77, %c0_78] : memref<9x8x4xbf16, #tpu.memory_space<vmem>>, vector<1x8x4xbf16>
    %111 = vector.shape_cast %110 : vector<1x8x4xbf16> to vector<8x4xbf16>
    %c5_79 = arith.constant 5 : index
    %c0_80 = arith.constant 0 : index
    %c0_81 = arith.constant 0 : index
    %112 = vector.load %arg3[%c5_79, %c0_80, %c0_81] : memref<9x8x4xbf16, #tpu.memory_space<vmem>>, vector<1x8x4xbf16>
    %113 = vector.shape_cast %112 : vector<1x8x4xbf16> to vector<8x4xbf16>
    %cst_82 = arith.constant dense<0.000000e+00> : vector<8x64xf32>
    %114 = tpu.matmul %111, %106, %cst_82 {dimension_numbers = #tpu.dot_dimension_numbers<[1], [1], [0], [0], [0, 0, 1, 0], [], []>} : vector<8x4xbf16>, vector<64x4xbf16>, vector<8x64xf32> -> vector<8x64xf32>
    %115 = arith.addf %103, %114 : vector<8x64xf32>
    %cst_83 = arith.constant dense<0.000000e+00> : vector<8x64xf32>
    %116 = tpu.matmul %111, %109, %cst_83 {dimension_numbers = #tpu.dot_dimension_numbers<[1], [1], [0], [0], [0, 0, 1, 0], [], []>} : vector<8x4xbf16>, vector<64x4xbf16>, vector<8x64xf32> -> vector<8x64xf32>
    %117 = arith.addf %115, %116 : vector<8x64xf32>
    %cst_84 = arith.constant dense<0.000000e+00> : vector<8x64xf32>
    %118 = tpu.matmul %113, %106, %cst_84 {dimension_numbers = #tpu.dot_dimension_numbers<[1], [1], [0], [0], [0, 0, 1, 0], [], []>} : vector<8x4xbf16>, vector<64x4xbf16>, vector<8x64xf32> -> vector<8x64xf32>
    %119 = arith.addf %117, %118 : vector<8x64xf32>
    %c2_85 = arith.constant 2 : index
    %c0_86 = arith.constant 0 : index
    %c0_87 = arith.constant 0 : index
    %120 = vector.load %arg6[%c2_85, %c0_86, %c0_87] : memref<10x10x4xf32, #tpu.memory_space<vmem>>, vector<8x8x4xf32>
    %121 = vector.shape_cast %120 : vector<8x8x4xf32> to vector<64x4xf32>
    %122 = arith.truncf %121 : vector<64x4xf32> to vector<64x4xbf16>
    %123 = arith.extf %122 : vector<64x4xbf16> to vector<64x4xf32>
    %124 = arith.subf %121, %123 : vector<64x4xf32>
    %125 = arith.truncf %124 : vector<64x4xf32> to vector<64x4xbf16>
    %c6 = arith.constant 6 : index
    %c0_88 = arith.constant 0 : index
    %c0_89 = arith.constant 0 : index
    %126 = vector.load %arg2[%c6, %c0_88, %c0_89] : memref<9x8x4xbf16, #tpu.memory_space<vmem>>, vector<1x8x4xbf16>
    %127 = vector.shape_cast %126 : vector<1x8x4xbf16> to vector<8x4xbf16>
    %c6_90 = arith.constant 6 : index
    %c0_91 = arith.constant 0 : index
    %c0_92 = arith.constant 0 : index
    %128 = vector.load %arg3[%c6_90, %c0_91, %c0_92] : memref<9x8x4xbf16, #tpu.memory_space<vmem>>, vector<1x8x4xbf16>
    %129 = vector.shape_cast %128 : vector<1x8x4xbf16> to vector<8x4xbf16>
    %cst_93 = arith.constant dense<0.000000e+00> : vector<8x64xf32>
    %130 = tpu.matmul %127, %122, %cst_93 {dimension_numbers = #tpu.dot_dimension_numbers<[1], [1], [0], [0], [0, 0, 1, 0], [], []>} : vector<8x4xbf16>, vector<64x4xbf16>, vector<8x64xf32> -> vector<8x64xf32>
    %131 = arith.addf %119, %130 : vector<8x64xf32>
    %cst_94 = arith.constant dense<0.000000e+00> : vector<8x64xf32>
    %132 = tpu.matmul %127, %125, %cst_94 {dimension_numbers = #tpu.dot_dimension_numbers<[1], [1], [0], [0], [0, 0, 1, 0], [], []>} : vector<8x4xbf16>, vector<64x4xbf16>, vector<8x64xf32> -> vector<8x64xf32>
    %133 = arith.addf %131, %132 : vector<8x64xf32>
    %cst_95 = arith.constant dense<0.000000e+00> : vector<8x64xf32>
    %134 = tpu.matmul %129, %122, %cst_95 {dimension_numbers = #tpu.dot_dimension_numbers<[1], [1], [0], [0], [0, 0, 1, 0], [], []>} : vector<8x4xbf16>, vector<64x4xbf16>, vector<8x64xf32> -> vector<8x64xf32>
    %135 = arith.addf %133, %134 : vector<8x64xf32>
    %c2_96 = arith.constant 2 : index
    %c1_97 = arith.constant 1 : index
    %c0_98 = arith.constant 0 : index
    %136 = vector.load %arg6[%c2_96, %c1_97, %c0_98] : memref<10x10x4xf32, #tpu.memory_space<vmem>>, vector<8x8x4xf32>
    %137 = vector.shape_cast %136 : vector<8x8x4xf32> to vector<64x4xf32>
    %138 = arith.truncf %137 : vector<64x4xf32> to vector<64x4xbf16>
    %139 = arith.extf %138 : vector<64x4xbf16> to vector<64x4xf32>
    %140 = arith.subf %137, %139 : vector<64x4xf32>
    %141 = arith.truncf %140 : vector<64x4xf32> to vector<64x4xbf16>
    %c7 = arith.constant 7 : index
    %c0_99 = arith.constant 0 : index
    %c0_100 = arith.constant 0 : index
    %142 = vector.load %arg2[%c7, %c0_99, %c0_100] : memref<9x8x4xbf16, #tpu.memory_space<vmem>>, vector<1x8x4xbf16>
    %143 = vector.shape_cast %142 : vector<1x8x4xbf16> to vector<8x4xbf16>
    %c7_101 = arith.constant 7 : index
    %c0_102 = arith.constant 0 : index
    %c0_103 = arith.constant 0 : index
    %144 = vector.load %arg3[%c7_101, %c0_102, %c0_103] : memref<9x8x4xbf16, #tpu.memory_space<vmem>>, vector<1x8x4xbf16>
    %145 = vector.shape_cast %144 : vector<1x8x4xbf16> to vector<8x4xbf16>
    %cst_104 = arith.constant dense<0.000000e+00> : vector<8x64xf32>
    %146 = tpu.matmul %143, %138, %cst_104 {dimension_numbers = #tpu.dot_dimension_numbers<[1], [1], [0], [0], [0, 0, 1, 0], [], []>} : vector<8x4xbf16>, vector<64x4xbf16>, vector<8x64xf32> -> vector<8x64xf32>
    %147 = arith.addf %135, %146 : vector<8x64xf32>
    %cst_105 = arith.constant dense<0.000000e+00> : vector<8x64xf32>
    %148 = tpu.matmul %143, %141, %cst_105 {dimension_numbers = #tpu.dot_dimension_numbers<[1], [1], [0], [0], [0, 0, 1, 0], [], []>} : vector<8x4xbf16>, vector<64x4xbf16>, vector<8x64xf32> -> vector<8x64xf32>
    %149 = arith.addf %147, %148 : vector<8x64xf32>
    %cst_106 = arith.constant dense<0.000000e+00> : vector<8x64xf32>
    %150 = tpu.matmul %145, %138, %cst_106 {dimension_numbers = #tpu.dot_dimension_numbers<[1], [1], [0], [0], [0, 0, 1, 0], [], []>} : vector<8x4xbf16>, vector<64x4xbf16>, vector<8x64xf32> -> vector<8x64xf32>
    %151 = arith.addf %149, %150 : vector<8x64xf32>
    %c2_107 = arith.constant 2 : index
    %c2_108 = arith.constant 2 : index
    %c0_109 = arith.constant 0 : index
    %152 = vector.load %arg6[%c2_107, %c2_108, %c0_109] : memref<10x10x4xf32, #tpu.memory_space<vmem>>, vector<8x8x4xf32>
    %153 = vector.shape_cast %152 : vector<8x8x4xf32> to vector<64x4xf32>
    %154 = arith.truncf %153 : vector<64x4xf32> to vector<64x4xbf16>
    %155 = arith.extf %154 : vector<64x4xbf16> to vector<64x4xf32>
    %156 = arith.subf %153, %155 : vector<64x4xf32>
    %157 = arith.truncf %156 : vector<64x4xf32> to vector<64x4xbf16>
    %c8 = arith.constant 8 : index
    %c0_110 = arith.constant 0 : index
    %c0_111 = arith.constant 0 : index
    %158 = vector.load %arg2[%c8, %c0_110, %c0_111] : memref<9x8x4xbf16, #tpu.memory_space<vmem>>, vector<1x8x4xbf16>
    %159 = vector.shape_cast %158 : vector<1x8x4xbf16> to vector<8x4xbf16>
    %c8_112 = arith.constant 8 : index
    %c0_113 = arith.constant 0 : index
    %c0_114 = arith.constant 0 : index
    %160 = vector.load %arg3[%c8_112, %c0_113, %c0_114] : memref<9x8x4xbf16, #tpu.memory_space<vmem>>, vector<1x8x4xbf16>
    %161 = vector.shape_cast %160 : vector<1x8x4xbf16> to vector<8x4xbf16>
    %cst_115 = arith.constant dense<0.000000e+00> : vector<8x64xf32>
    %162 = tpu.matmul %159, %154, %cst_115 {dimension_numbers = #tpu.dot_dimension_numbers<[1], [1], [0], [0], [0, 0, 1, 0], [], []>} : vector<8x4xbf16>, vector<64x4xbf16>, vector<8x64xf32> -> vector<8x64xf32>
    %163 = arith.addf %151, %162 : vector<8x64xf32>
    %cst_116 = arith.constant dense<0.000000e+00> : vector<8x64xf32>
    %164 = tpu.matmul %159, %157, %cst_116 {dimension_numbers = #tpu.dot_dimension_numbers<[1], [1], [0], [0], [0, 0, 1, 0], [], []>} : vector<8x4xbf16>, vector<64x4xbf16>, vector<8x64xf32> -> vector<8x64xf32>
    %165 = arith.addf %163, %164 : vector<8x64xf32>
    %cst_117 = arith.constant dense<0.000000e+00> : vector<8x64xf32>
    %166 = tpu.matmul %161, %154, %cst_117 {dimension_numbers = #tpu.dot_dimension_numbers<[1], [1], [0], [0], [0, 0, 1, 0], [], []>} : vector<8x4xbf16>, vector<64x4xbf16>, vector<8x64xf32> -> vector<8x64xf32>
    %167 = arith.addf %165, %166 : vector<8x64xf32>
    %c0_118 = arith.constant 0 : index
    %c0_119 = arith.constant 0 : index
    %c0_120 = arith.constant 0 : index
    %168 = vector.load %arg4[%c0_118, %c0_119, %c0_120] : memref<1x8x64xf32, #tpu.memory_space<vmem>>, vector<1x8x64xf32>
    %169 = vector.shape_cast %168 : vector<1x8x64xf32> to vector<8x64xf32>
    %170 = vector.shape_cast %167 : vector<8x64xf32> to vector<1x8x64xf32>
    tpu.vector_store %arg4[%c0_118, %c0_119, %c0_120], %170 {strides = array<i32>} : memref<1x8x64xf32, #tpu.memory_space<vmem>>, vector<1x8x64xf32>,
    %cst_121 = arith.constant dense<0.000000e+00> : vector<8xf32>
    %171 = vector.multi_reduction <add>, %167, %cst_121 [1] : vector<8x64xf32> to vector<8xf32>
    %172 = vector.shape_cast %171 : vector<8xf32> to vector<8x1xf32>
    %c0_122 = arith.constant 0 : index
    %c0_123 = arith.constant 0 : index
    %c0_124 = arith.constant 0 : index
    %173 = vector.load %arg5[%c0_122, %c0_123, %c0_124] : memref<1x8x2xf32, #tpu.memory_space<vmem>>, vector<1x8x1xf32>
    %174 = vector.shape_cast %173 : vector<1x8x1xf32> to vector<8x1xf32>
    %175 = vector.shape_cast %172 : vector<8x1xf32> to vector<1x8x1xf32>
    tpu.vector_store %arg5[%c0_122, %c0_123, %c0_124], %175 {strides = array<i32>} : memref<1x8x2xf32, #tpu.memory_space<vmem>>, vector<1x8x1xf32>,
    %176 = arith.mulf %167, %167 : vector<8x64xf32>
    %cst_125 = arith.constant dense<0.000000e+00> : vector<8xf32>
    %177 = vector.multi_reduction <add>, %176, %cst_125 [1] : vector<8x64xf32> to vector<8xf32>
    %178 = vector.shape_cast %177 : vector<8xf32> to vector<8x1xf32>
    %c0_126 = arith.constant 0 : index
    %c0_127 = arith.constant 0 : index
    %c1_128 = arith.constant 1 : index
    %179 = vector.load %arg5[%c0_126, %c0_127, %c1_128] : memref<1x8x2xf32, #tpu.memory_space<vmem>>, vector<1x8x1xf32>
    %180 = vector.shape_cast %179 : vector<1x8x1xf32> to vector<8x1xf32>
    %181 = vector.shape_cast %178 : vector<8x1xf32> to vector<1x8x1xf32>
    tpu.vector_store %arg5[%c0_126, %c0_127, %c1_128], %181 {strides = array<i32>} : memref<1x8x2xf32, #tpu.memory_space<vmem>>, vector<1x8x1xf32>,
    return
  }
  func.func @transform_0(%arg0: i32) -> (i32, i32, i32, i32) {
    %c0_i32 = arith.constant 0 : i32
    %c0_i32_0 = arith.constant 0 : i32
    %c0_i32_1 = arith.constant 0 : i32
    %c0_i32_2 = arith.constant 0 : i32
    return %arg0, %c0_i32, %c0_i32_0, %c0_i32_1 : i32, i32, i32, i32
  }
  func.func @transform_1(%arg0: i32) -> (i32, i32, i32) {
    %c0_i32 = arith.constant 0 : i32
    %c0_i32_0 = arith.constant 0 : i32
    %c0_i32_1 = arith.constant 0 : i32
    %c0_i32_2 = arith.constant 0 : i32
    return %c0_i32, %c0_i32_0, %c0_i32_1 : i32, i32, i32
  }
  func.func @transform_2(%arg0: i32) -> (i32, i32, i32) {
    %c0_i32 = arith.constant 0 : i32
    %c0_i32_0 = arith.constant 0 : i32
    %c0_i32_1 = arith.constant 0 : i32
    %c0_i32_2 = arith.constant 0 : i32
    return %c0_i32, %c0_i32_0, %c0_i32_1 : i32, i32, i32
  }
  func.func @transform_3(%arg0: i32) -> (i32, i32, i32) {
    %c0_i32 = arith.constant 0 : i32
    %c0_i32_0 = arith.constant 0 : i32
    %c0_i32_1 = arith.constant 0 : i32
    return %arg0, %c0_i32, %c0_i32_0 : i32, i32, i32
  }
  func.func @transform_4(%arg0: i32) -> (i32, i32, i32) {
    %c0_i32 = arith.constant 0 : i32
    %c0_i32_0 = arith.constant 0 : i32
    %c0_i32_1 = arith.constant 0 : i32
    return %arg0, %c0_i32, %c0_i32_0 : i32, i32, i32
  }
}

module attributes {stable_mosaic.version = 11 : i64} {
  func.func @_bn_lrelu_kernel(%arg0: i32, %arg1: memref<1x8x64xf32, #tpu.memory_space<vmem>>, %arg2: memref<8x1xf32, #tpu.memory_space<vmem>>, %arg3: memref<8x1xf32, #tpu.memory_space<vmem>>, %arg4: memref<1x8x64xf32, #tpu.memory_space<vmem>>) attributes {dimension_semantics = [#tpu.dimension_semantics<parallel>], iteration_bounds = array<i64: 2>, scalar_prefetch = 0 : i64, scratch_operands = 0 : i64, tpu.core_type = #tpu.core_type<tc>, window_params = [{transform_indices = @transform_0, window_bounds = array<i64: 1, 8, 64>}, {pipeline_mode = #tpu.pipeline_mode<synchronous>, transform_indices = @transform_1, window_bounds = array<i64: 8, 1>}, {pipeline_mode = #tpu.pipeline_mode<synchronous>, transform_indices = @transform_2, window_bounds = array<i64: 8, 1>}, {transform_indices = @transform_3, window_bounds = array<i64: 1, 8, 64>}]} {
    %c0 = arith.constant 0 : index
    %c0_0 = arith.constant 0 : index
    %c0_1 = arith.constant 0 : index
    %0 = vector.load %arg1[%c0, %c0_0, %c0_1] : memref<1x8x64xf32, #tpu.memory_space<vmem>>, vector<1x8x64xf32>
    %1 = vector.shape_cast %0 : vector<1x8x64xf32> to vector<8x64xf32>
    %c0_2 = arith.constant 0 : index
    %c0_3 = arith.constant 0 : index
    %2 = vector.load %arg2[%c0_2, %c0_3] : memref<8x1xf32, #tpu.memory_space<vmem>>, vector<8x1xf32>
    %3 = vector.broadcast %2 : vector<8x1xf32> to vector<8x64xf32>
    %4 = arith.mulf %1, %3 : vector<8x64xf32>
    %c0_4 = arith.constant 0 : index
    %c0_5 = arith.constant 0 : index
    %5 = vector.load %arg3[%c0_4, %c0_5] : memref<8x1xf32, #tpu.memory_space<vmem>>, vector<8x1xf32>
    %6 = vector.broadcast %5 : vector<8x1xf32> to vector<8x64xf32>
    %7 = arith.addf %4, %6 : vector<8x64xf32>
    %cst = arith.constant 0.000000e+00 : f32
    %8 = vector.broadcast %cst : f32 to vector<8x64xf32>
    %9 = arith.cmpf oge, %7, %8 : vector<8x64xf32>
    %cst_6 = arith.constant 0.00999999977 : f32
    %10 = vector.broadcast %cst_6 : f32 to vector<8x64xf32>
    %11 = arith.mulf %10, %7 : vector<8x64xf32>
    %12 = arith.select %9, %7, %11 : vector<8x64xi1>, vector<8x64xf32>
    %c0_7 = arith.constant 0 : index
    %c0_8 = arith.constant 0 : index
    %c0_9 = arith.constant 0 : index
    %13 = vector.load %arg4[%c0_7, %c0_8, %c0_9] : memref<1x8x64xf32, #tpu.memory_space<vmem>>, vector<1x8x64xf32>
    %14 = vector.shape_cast %13 : vector<1x8x64xf32> to vector<8x64xf32>
    %15 = vector.shape_cast %12 : vector<8x64xf32> to vector<1x8x64xf32>
    tpu.vector_store %arg4[%c0_7, %c0_8, %c0_9], %15 {strides = array<i32>} : memref<1x8x64xf32, #tpu.memory_space<vmem>>, vector<1x8x64xf32>,
    return
  }
  func.func @transform_0(%arg0: i32) -> (i32, i32, i32) {
    %c0_i32 = arith.constant 0 : i32
    %c0_i32_0 = arith.constant 0 : i32
    %c0_i32_1 = arith.constant 0 : i32
    return %arg0, %c0_i32, %c0_i32_0 : i32, i32, i32
  }
  func.func @transform_1(%arg0: i32) -> (i32, i32) {
    %c0_i32 = arith.constant 0 : i32
    %c0_i32_0 = arith.constant 0 : i32
    %c0_i32_1 = arith.constant 0 : i32
    return %c0_i32, %c0_i32_0 : i32, i32
  }
  func.func @transform_2(%arg0: i32) -> (i32, i32) {
    %c0_i32 = arith.constant 0 : i32
    %c0_i32_0 = arith.constant 0 : i32
    %c0_i32_1 = arith.constant 0 : i32
    return %c0_i32, %c0_i32_0 : i32, i32
  }
  func.func @transform_3(%arg0: i32) -> (i32, i32, i32) {
    %c0_i32 = arith.constant 0 : i32
    %c0_i32_0 = arith.constant 0 : i32
    %c0_i32_1 = arith.constant 0 : i32
    return %arg0, %c0_i32, %c0_i32_0 : i32, i32, i32
  }
}

</mosaic_0001>

<llo_original>
// kernel: down_cbr_forward.3
$region0: #{down_cbr_forward.3}
  #allocation0 [shape = 'u32[]', space=smem, size = 0x4, offset = 0x4, fixed_abs, tag = 'smem constant byte address 0x4 - core index']
  #allocation1 [shape = 'u32[144,128]{1,0:T(1,128)}', space=vmem, size = 0x12000, scoped, tag = 'internal scratch']
  %s0 = inlined_call_operand.vmem [shape: f32[2,8,64], index: 0, kind: input, shape index: {}]
  %s1 = inlined_call_operand.vmem [shape: f32[8,1], index: 1, kind: input, shape index: {}]
  %s2 = inlined_call_operand.vmem [shape: f32[8,1], index: 2, kind: input, shape index: {}]
  %s3 = inlined_call_operand.vmem [shape: f32[2,8,64], index: 3, kind: output, shape index: {}]
  %s4 = sld [smem:[#allocation0]]
  $region45: #{down_cbr_forward.3} parent=0
    _
  %s6 = ssub.s32 1, %s4
  %s7 = scalar_select 0, %s6, %s4
  loop: start=0, step=1, limit=4
  $region2: #{down_cbr_forward.3} parent=0 // loop_pre_header
    _
  $region3: #{down_cbr_forward.3} parent=0 // loop_header
    %s9 = sphi 0, %s13
    %p10 = scmp.ge.s32.totalorder %s9, 4
    %s19 = sphi 0, %s21
    %s22 = sphi 0, %s19
    %s23 = sphi 0, %s22
    %s39 = sphi 0, %s23
    %s43 = sphi 0, %s43
    %s45 = sphi 0, %s43
    %s46 = sphi 0, %s45
    %s60 = sphi 0, %s46
    %s64 = sphi 0, %s64
    %s66 = sphi 0, %s64
    %s67 = sphi 0, %s66
    %s81 = sphi 0, %s67
    %s87 = sphi 0, %s89
    %s90 = sphi 0, %s87
    %s91 = sphi 0, %s90
    %s107 = sphi 0, %s91
  $region4: #{down_cbr_forward.3} parent=0 // loop_header_branch
    %12 = sbr.rel (%p10) target = $region8
  $region5: #{down_cbr_forward.3} parent=0 // loop_body
    %s14 = ssub.s32 %s9, 1
    %s15 = ssub.s32 %s9, 2
    %s16 = sadd.s32 %s9, 1
    %s17 = ssub.s32 %s9, %s16
    %p18 = scmp.eq.s32.totalorder %s17, 0
    %s20 = sadd.s32 %s19, 1
    %s21 = scalar_select %p18, %s19, %s20
    %p24 = pneg %p18
    %p25 = scmp.eq.s32.totalorder %s9, 1
    %p26 = por %p24, %p25
    %p27 = scmp.ne.s32.totalorder %s19, %s22
    %p28 = scmp.eq.s32.totalorder %s9, 0
    %p29 = por %p27, %p28
    %p30 = scmp.ne.s32.totalorder %s19, %s22
    %p31 = scmp.eq.s32.totalorder %s14, 1
    %p32 = por %p30, %p31
    %p33 = scmp.ne.s32.totalorder %s22, %s23
    %p34 = scmp.eq.s32.totalorder %s14, 0
    %p35 = por %p33, %p34
    %p36 = scmp.ne.s32.totalorder %s22, %s23
    %p37 = scmp.eq.s32.totalorder %s15, 1
    %p38 = por %p36, %p37
    %p40 = scmp.ne.s32.totalorder %s23, %s39
    %p41 = scmp.eq.s32.totalorder %s15, 0
    %p42 = por %p40, %p41
    %s44 = sadd.s32 %s43, 1
    %p47 = scmp.eq.s32.totalorder %s9, 1
    %p48 = scmp.ne.s32.totalorder %s43, %s45
    %p49 = scmp.eq.s32.totalorder %s9, 0
    %p50 = por %p48, %p49
    %p51 = scmp.ne.s32.totalorder %s43, %s45
    %p52 = scmp.eq.s32.totalorder %s14, 1
    %p53 = por %p51, %p52
    %p54 = scmp.ne.s32.totalorder %s45, %s46
    %p55 = scmp.eq.s32.totalorder %s14, 0
    %p56 = por %p54, %p55
    %p57 = scmp.ne.s32.totalorder %s45, %s46
    %p58 = scmp.eq.s32.totalorder %s15, 1
    %p59 = por %p57, %p58
    %p61 = scmp.ne.s32.totalorder %s46, %s60
    %p62 = scmp.eq.s32.totalorder %s15, 0
    %p63 = por %p61, %p62
    %s65 = sadd.s32 %s64, 1
    %p68 = scmp.eq.s32.totalorder %s9, 1
    %p69 = scmp.ne.s32.totalorder %s64, %s66
    %p70 = scmp.eq.s32.totalorder %s9, 0
    %p71 = por %p69, %p70
    %p72 = scmp.ne.s32.totalorder %s64, %s66
    %p73 = scmp.eq.s32.totalorder %s14, 1
    %p74 = por %p72, %p73
    %p75 = scmp.ne.s32.totalorder %s66, %s67
    %p76 = scmp.eq.s32.totalorder %s14, 0
    %p77 = por %p75, %p76
    %p78 = scmp.ne.s32.totalorder %s66, %s67
    %p79 = scmp.eq.s32.totalorder %s15, 1
    %p80 = por %p78, %p79
    %p82 = scmp.ne.s32.totalorder %s67, %s81
    %p83 = scmp.eq.s32.totalorder %s15, 0
    %p84 = por %p82, %p83
    %s85 = ssub.s32 %s9, %s16
    %p86 = scmp.eq.s32.totalorder %s85, 0
    %s88 = sadd.s32 %s87, 1
    %s89 = scalar_select %p86, %s87, %s88
    %p92 = pneg %p86
    %p93 = scmp.eq.s32.totalorder %s9, 1
    %p94 = por %p92, %p93
    %p95 = scmp.ne.s32.totalorder %s87, %s90
    %p96 = scmp.eq.s32.totalorder %s9, 0
    %p97 = por %p95, %p96
    %p98 = scmp.ne.s32.totalorder %s87, %s90
    %p99 = scmp.eq.s32.totalorder %s14, 1
    %p100 = por %p98, %p99
    %p101 = scmp.ne.s32.totalorder %s90, %s91
    %p102 = scmp.eq.s32.totalorder %s14, 0
    %p103 = por %p101, %p102
    %p104 = scmp.ne.s32.totalorder %s90, %s91
    %p105 = scmp.eq.s32.totalorder %s15, 1
    %p106 = por %p104, %p105
    %p108 = scmp.ne.s32.totalorder %s91, %s107
    %p109 = scmp.eq.s32.totalorder %s15, 0
    %p110 = por %p108, %p109
    %p111 = scmp.le.s32.totalorder 1, %s9
    %p112 = scmp.lt.s32.totalorder %s9, 3
    %p113 = pnand %p111, %p112
    %p114 = pneg %p113
    // Predicated region
    $region9: #{down_cbr_forward.3} parent=5 // pred_check
      _
    $region10: #{down_cbr_forward.3} parent=5 // pred_check_branch
      %116 = sbr.rel (%p113) target = $region12
    $region11: #{down_cbr_forward.3} parent=5 // pred_region
      %s117 = ssub.s32 %s9, 1
      // Predicated region
      $region13: #{down_cbr_forward.3} parent=11 // pred_check
        %p118 = pneg %p56
      $region14: #{down_cbr_forward.3} parent=11 // pred_check_branch
        %120 = sbr.rel (%p118) target = $region16
      $region15: #{down_cbr_forward.3} parent=11 // pred_region
        _
      $region16: #{down_cbr_forward.3} parent=11 // pred_fallthru
        _
      // Predicated region
      $region17: #{down_cbr_forward.3} parent=11 // pred_check
        %p121 = pneg %p77
      $region18: #{down_cbr_forward.3} parent=11 // pred_check_branch
        %123 = sbr.rel (%p121) target = $region20
      $region19: #{down_cbr_forward.3} parent=11 // pred_region
        _
      $region20: #{down_cbr_forward.3} parent=11 // pred_fallthru
        _
    $region12: #{down_cbr_forward.3} parent=5 // pred_fallthru
      _
    %p124 = scmp.lt.s32.totalorder %s9, 2
    // Predicated region
    $region21: #{down_cbr_forward.3} parent=5 // pred_check
      %p125 = pneg %p124
    $region22: #{down_cbr_forward.3} parent=5 // pred_check_branch
      %127 = sbr.rel (%p125) target = $region24
    $region23: #{down_cbr_forward.3} parent=5 // pred_region
      // Predicated region
      $region25: #{down_cbr_forward.3} parent=23 // pred_check
        %p128 = pneg %p29
      $region26: #{down_cbr_forward.3} parent=23 // pred_check_branch
        %130 = sbr.rel (%p128) target = $region28
      $region27: #{down_cbr_forward.3} parent=23 // pred_region
        %p131 = scmp.lt.s32.totalorder %s9, 1
        %s132 = scalar_select %p131, %s9, 1
        %s133 = smul.addr %s132, 8
        %s134 = scalar_lea.vmem %s0, %s133
      $region28: #{down_cbr_forward.3} parent=23 // pred_fallthru
        _
    $region24: #{down_cbr_forward.3} parent=5 // pred_fallthru
      _
    %p135 = scmp.le.s32.totalorder 1, %s9
    %p136 = scmp.lt.s32.totalorder %s9, 3
    %p137 = pnand %p135, %p136
    %p138 = pneg %p137
    // Predicated region
    $region29: #{down_cbr_forward.3} parent=5 // pred_check
      _
    $region30: #{down_cbr_forward.3} parent=5 // pred_check_branch
      %140 = sbr.rel (%p137) target = $region32
    $region31: #{down_cbr_forward.3} parent=5 // pred_region
      %s141 = ssub.s32 %s9, 1
      %p142 = scmp.lt.s32.totalorder %s14, 1
      %s143 = scalar_select %p142, %s14, 1
      %s144 = smul.addr %s143, 8
      %s145 = scalar_lea.vmem %s0, %s144
      %p146 = pneg %p35
      %p147 = pneg %p32
      %p148 = pneg %p56
      %p149 = pneg %p53
      %p150 = pneg %p77
      %p151 = pneg %p74
      %p152 = pneg %p103
      %p153 = pneg %p100
      %p154 = scmp.lt.s32.totalorder %s14, 1
      %s155 = scalar_select %p154, %s14, 1
      %s156 = smul.addr %s155, 8
      %s157 = scalar_lea.vmem %s3, %s156
      %p158 = scmp.lt.s32.totalorder %s14, 1
      %s159 = scalar_select %p158, %s14, 1
      %s160 = smul.addr %s159, 8
      %s161 = scalar_lea.vmem %s0, %s160
      %p162 = scmp.lt.s32.totalorder %s14, 1
      %s163 = scalar_select %p162, %s14, 1
      %s164 = smul.addr %s163, 8
      %s165 = scalar_lea.vmem %s3, %s164
      %v166 = vld [vmem:[%s161] sm:$0xff]
      %v167 = vld [vmem:[%s1] sm:$0xff]
      %169 = vset.pattern.permute.xlu0 0
      %170 = vperm.xlu0 %169, %v167
      %v171 = vpop.permute.xlu0 %170
      %v173 = vmul.f32 %v166, %v171
      %v174 = vld [vmem:[%s2] sm:$0xff]
      %176 = vset.pattern.permute.xlu0 0
      %177 = vperm.xlu0 %176, %v174
      %v178 = vpop.permute.xlu0 %177
      %v180 = vadd.f32 %v173, %v178
      %vm181 = vcmp.ge.f32.partialorder %v180, 0.0
      %v182 = vmul.f32 %v180, 0.01
      %v183 = vsel %vm181, %v180, %v182
      %vm184 = vcmask 523264
      %185 = vst.msk [vmem:[%s165] sm:$0xff] %vm184, %v183
      %p186 = scmp.lt.s32.totalorder %s14, 1
      %s187 = scalar_select %p186, %s14, 1
      %s188 = smul.addr %s187, 8
      %s189 = scalar_lea.vmem %s3, %s188
      // Predicated region
      $region33: #{down_cbr_forward.3} parent=31 // pred_check
        %p190 = pneg %p100
      $region34: #{down_cbr_forward.3} parent=31 // pred_check_branch
        %192 = sbr.rel (%p190) target = $region36
      $region35: #{down_cbr_forward.3} parent=31 // pred_region
        _
      $region36: #{down_cbr_forward.3} parent=31 // pred_fallthru
        _
    $region32: #{down_cbr_forward.3} parent=5 // pred_fallthru
      _
    %p193 = scmp.le.s32.totalorder 2, %s9
    // Predicated region
    $region37: #{down_cbr_forward.3} parent=5 // pred_check
      %p194 = pneg %p193
    $region38: #{down_cbr_forward.3} parent=5 // pred_check_branch
      %196 = sbr.rel (%p194) target = $region40
    $region39: #{down_cbr_forward.3} parent=5 // pred_region
      %s197 = ssub.s32 %s9, 2
      // Predicated region
      $region41: #{down_cbr_forward.3} parent=39 // pred_check
        %p198 = pneg %p106
      $region42: #{down_cbr_forward.3} parent=39 // pred_check_branch
        %200 = sbr.rel (%p198) target = $region44
      $region43: #{down_cbr_forward.3} parent=39 // pred_region
        %p201 = scmp.lt.s32.totalorder %s15, 1
        %s202 = scalar_select %p201, %s15, 1
        %s203 = smul.addr %s202, 8
        %s204 = scalar_lea.vmem %s3, %s203
      $region44: #{down_cbr_forward.3} parent=39 // pred_fallthru
        _
    $region40: #{down_cbr_forward.3} parent=5 // pred_fallthru
      _
  $region6: #{down_cbr_forward.3} parent=0 // loop_footer
    %s13 = sadd.s32 1, %s9
  $region7: #{down_cbr_forward.3} parent=0 // loop_footer_branch
    %8 = sbr.rel target = $region3
  $region8: #{down_cbr_forward.3} parent=0 // loop_exit
    _

// kernel: down_cbr_forward.2
$region0: #{down_cbr_forward.2}
  #allocation0 [shape = 'u32[]', space=smem, size = 0x4, offset = 0x4, fixed_abs, tag = 'smem constant byte address 0x4 - core index']
  #allocation1 [shape = 'u32[144,128]{1,0:T(1,128)}', space=vmem, size = 0x12000, scoped, tag = 'internal scratch']
  #allocation2 [shape = 'f32[10,10,4]{2,1,0:T(8,128)}', space=vmem, size = 0x14000, scoped, tag = 'scratch operand']
  %s0 = inlined_call_operand.vmem [shape: f32[2,16,8,8], index: 0, kind: input, shape index: {}]
  %s1 = inlined_call_operand.vmem [shape: bf16[9,8,4], index: 1, kind: input, shape index: {}]
  %s2 = inlined_call_operand.vmem [shape: bf16[9,8,4], index: 2, kind: input, shape index: {}]
  %s3 = inlined_call_operand.vmem [shape: f32[2,8,64], index: 3, kind: output, shape index: {0}]
  %s4 = inlined_call_operand.vmem [shape: f32[2,8,2], index: 4, kind: output, shape index: {1}]
  %5 = xla_tuple %s3, %s4
  %s6 = sld [smem:[#allocation0]]
  $region53: #{down_cbr_forward.2} parent=0
    _
  %s8 = ssub.s32 1, %s6
  %s9 = scalar_select 0, %s8, %s6
  loop: start=0, step=1, limit=4
  $region2: #{down_cbr_forward.2} parent=0 // loop_pre_header
    _
  $region3: #{down_cbr_forward.2} parent=0 // loop_header
    %s11 = sphi 0, %s15
    %p12 = scmp.ge.s32.totalorder %s11, 4
    %s21 = sphi 0, %s23
    %s24 = sphi 0, %s21
    %s25 = sphi 0, %s24
    %s41 = sphi 0, %s25
    %s45 = sphi 0, %s45
    %s47 = sphi 0, %s45
    %s48 = sphi 0, %s47
    %s62 = sphi 0, %s48
    %s66 = sphi 0, %s66
    %s68 = sphi 0, %s66
    %s69 = sphi 0, %s68
    %s83 = sphi 0, %s69
    %s89 = sphi 0, %s91
    %s92 = sphi 0, %s89
    %s93 = sphi 0, %s92
    %s109 = sphi 0, %s93
    %s115 = sphi 0, %s117
    %s118 = sphi 0, %s115
    %s119 = sphi 0, %s118
    %s135 = sphi 0, %s119
  $region4: #{down_cbr_forward.2} parent=0 // loop_header_branch
    %14 = sbr.rel (%p12) target = $region8
  $region5: #{down_cbr_forward.2} parent=0 // loop_body
    %s16 = ssub.s32 %s11, 1
    %s17 = ssub.s32 %s11, 2
    %s18 = sadd.s32 %s11, 1
    %s19 = ssub.s32 %s11, %s18
    %p20 = scmp.eq.s32.totalorder %s19, 0
    %s22 = sadd.s32 %s21, 1
    %s23 = scalar_select %p20, %s21, %s22
    %p26 = pneg %p20
    %p27 = scmp.eq.s32.totalorder %s11, 1
    %p28 = por %p26, %p27
    %p29 = scmp.ne.s32.totalorder %s21, %s24
    %p30 = scmp.eq.s32.totalorder %s11, 0
    %p31 = por %p29, %p30
    %p32 = scmp.ne.s32.totalorder %s21, %s24
    %p33 = scmp.eq.s32.totalorder %s16, 1
    %p34 = por %p32, %p33
    %p35 = scmp.ne.s32.totalorder %s24, %s25
    %p36 = scmp.eq.s32.totalorder %s16, 0
    %p37 = por %p35, %p36
    %p38 = scmp.ne.s32.totalorder %s24, %s25
    %p39 = scmp.eq.s32.totalorder %s17, 1
    %p40 = por %p38, %p39
    %p42 = scmp.ne.s32.totalorder %s25, %s41
    %p43 = scmp.eq.s32.totalorder %s17, 0
    %p44 = por %p42, %p43
    %s46 = sadd.s32 %s45, 1
    %p49 = scmp.eq.s32.totalorder %s11, 1
    %p50 = scmp.ne.s32.totalorder %s45, %s47
    %p51 = scmp.eq.s32.totalorder %s11, 0
    %p52 = por %p50, %p51
    %p53 = scmp.ne.s32.totalorder %s45, %s47
    %p54 = scmp.eq.s32.totalorder %s16, 1
    %p55 = por %p53, %p54
    %p56 = scmp.ne.s32.totalorder %s47, %s48
    %p57 = scmp.eq.s32.totalorder %s16, 0
    %p58 = por %p56, %p57
    %p59 = scmp.ne.s32.totalorder %s47, %s48
    %p60 = scmp.eq.s32.totalorder %s17, 1
    %p61 = por %p59, %p60
    %p63 = scmp.ne.s32.totalorder %s48, %s62
    %p64 = scmp.eq.s32.totalorder %s17, 0
    %p65 = por %p63, %p64
    %s67 = sadd.s32 %s66, 1
    %p70 = scmp.eq.s32.totalorder %s11, 1
    %p71 = scmp.ne.s32.totalorder %s66, %s68
    %p72 = scmp.eq.s32.totalorder %s11, 0
    %p73 = por %p71, %p72
    %p74 = scmp.ne.s32.totalorder %s66, %s68
    %p75 = scmp.eq.s32.totalorder %s16, 1
    %p76 = por %p74, %p75
    %p77 = scmp.ne.s32.totalorder %s68, %s69
    %p78 = scmp.eq.s32.totalorder %s16, 0
    %p79 = por %p77, %p78
    %p80 = scmp.ne.s32.totalorder %s68, %s69
    %p81 = scmp.eq.s32.totalorder %s17, 1
    %p82 = por %p80, %p81
    %p84 = scmp.ne.s32.totalorder %s69, %s83
    %p85 = scmp.eq.s32.totalorder %s17, 0
    %p86 = por %p84, %p85
    %s87 = ssub.s32 %s11, %s18
    %p88 = scmp.eq.s32.totalorder %s87, 0
    %s90 = sadd.s32 %s89, 1
    %s91 = scalar_select %p88, %s89, %s90
    %p94 = pneg %p88
    %p95 = scmp.eq.s32.totalorder %s11, 1
    %p96 = por %p94, %p95
    %p97 = scmp.ne.s32.totalorder %s89, %s92
    %p98 = scmp.eq.s32.totalorder %s11, 0
    %p99 = por %p97, %p98
    %p100 = scmp.ne.s32.totalorder %s89, %s92
    %p101 = scmp.eq.s32.totalorder %s16, 1
    %p102 = por %p100, %p101
    %p103 = scmp.ne.s32.totalorder %s92, %s93
    %p104 = scmp.eq.s32.totalorder %s16, 0
    %p105 = por %p103, %p104
    %p106 = scmp.ne.s32.totalorder %s92, %s93
    %p107 = scmp.eq.s32.totalorder %s17, 1
    %p108 = por %p106, %p107
    %p110 = scmp.ne.s32.totalorder %s93, %s109
    %p111 = scmp.eq.s32.totalorder %s17, 0
    %p112 = por %p110, %p111
    %s113 = ssub.s32 %s11, %s18
    %p114 = scmp.eq.s32.totalorder %s113, 0
    %s116 = sadd.s32 %s115, 1
    %s117 = scalar_select %p114, %s115, %s116
    %p120 = pneg %p114
    %p121 = scmp.eq.s32.totalorder %s11, 1
    %p122 = por %p120, %p121
    %p123 = scmp.ne.s32.totalorder %s115, %s118
    %p124 = scmp.eq.s32.totalorder %s11, 0
    %p125 = por %p123, %p124
    %p126 = scmp.ne.s32.totalorder %s115, %s118
    %p127 = scmp.eq.s32.totalorder %s16, 1
    %p128 = por %p126, %p127
    %p129 = scmp.ne.s32.totalorder %s118, %s119
    %p130 = scmp.eq.s32.totalorder %s16, 0
    %p131 = por %p129, %p130
    %p132 = scmp.ne.s32.totalorder %s118, %s119
    %p133 = scmp.eq.s32.totalorder %s17, 1
    %p134 = por %p132, %p133
    %p136 = scmp.ne.s32.totalorder %s119, %s135
    %p137 = scmp.eq.s32.totalorder %s17, 0
    %p138 = por %p136, %p137
    %p139 = scmp.le.s32.totalorder 1, %s11
    %p140 = scmp.lt.s32.totalorder %s11, 3
    %p141 = pnand %p139, %p140
    %p142 = pneg %p141
    // Predicated region
    $region9: #{down_cbr_forward.2} parent=5 // pred_check
      _
    $region10: #{down_cbr_forward.2} parent=5 // pred_check_branch
      %144 = sbr.rel (%p141) target = $region12
    $region11: #{down_cbr_forward.2} parent=5 // pred_region
      %s145 = ssub.s32 %s11, 1
      // Predicated region
      $region13: #{down_cbr_forward.2} parent=11 // pred_check
        %p146 = pneg %p58
      $region14: #{down_cbr_forward.2} parent=11 // pred_check_branch
        %148 = sbr.rel (%p146) target = $region16
      $region15: #{down_cbr_forward.2} parent=11 // pred_region
        _
      $region16: #{down_cbr_forward.2} parent=11 // pred_fallthru
        _
      // Predicated region
      $region17: #{down_cbr_forward.2} parent=11 // pred_check
        %p149 = pneg %p79
      $region18: #{down_cbr_forward.2} parent=11 // pred_check_branch
        %151 = sbr.rel (%p149) target = $region20
      $region19: #{down_cbr_forward.2} parent=11 // pred_region
        _
      $region20: #{down_cbr_forward.2} parent=11 // pred_fallthru
        _
    $region12: #{down_cbr_forward.2} parent=5 // pred_fallthru
      _
    %p152 = scmp.lt.s32.totalorder %s11, 2
    // Predicated region
    $region21: #{down_cbr_forward.2} parent=5 // pred_check
      %p153 = pneg %p152
    $region22: #{down_cbr_forward.2} parent=5 // pred_check_branch
      %155 = sbr.rel (%p153) target = $region24
    $region23: #{down_cbr_forward.2} parent=5 // pred_region
      // Predicated region
      $region25: #{down_cbr_forward.2} parent=23 // pred_check
        %p156 = pneg %p31
      $region26: #{down_cbr_forward.2} parent=23 // pred_check_branch
        %158 = sbr.rel (%p156) target = $region28
      $region27: #{down_cbr_forward.2} parent=23 // pred_region
        %p159 = scmp.lt.s32.totalorder %s11, 1
        %s160 = scalar_select %p159, %s11, 1
        %s161 = smul.addr %s160, 16
        %s162 = smul.addr %s161, 8
        %s163 = scalar_lea.vmem %s0, %s162
      $region28: #{down_cbr_forward.2} parent=23 // pred_fallthru
        _
    $region24: #{down_cbr_forward.2} parent=5 // pred_fallthru
      _
    %p164 = scmp.le.s32.totalorder 1, %s11
    %p165 = scmp.lt.s32.totalorder %s11, 3
    %p166 = pnand %p164, %p165
    %p167 = pneg %p166
    // Predicated region
    $region29: #{down_cbr_forward.2} parent=5 // pred_check
      _
    $region30: #{down_cbr_forward.2} parent=5 // pred_check_branch
      %169 = sbr.rel (%p166) target = $region32
    $region31: #{down_cbr_forward.2} parent=5 // pred_region
      %s170 = ssub.s32 %s11, 1
      %p171 = scmp.lt.s32.totalorder %s16, 1
      %s172 = scalar_select %p171, %s16, 1
      %s173 = smul.addr %s172, 16
      %s174 = smul.addr %s173, 8
      %s175 = scalar_lea.vmem %s0, %s174
      %p176 = pneg %p37
      %p177 = pneg %p34
      %p178 = pneg %p58
      %p179 = pneg %p55
      %p180 = pneg %p79
      %p181 = pneg %p76
      %p182 = pneg %p105
      %p183 = pneg %p102
      %p184 = scmp.lt.s32.totalorder %s16, 1
      %s185 = scalar_select %p184, %s16, 1
      %s186 = smul.addr %s185, 8
      %s187 = scalar_lea.vmem %s3, %s186
      %p188 = pneg %p131
      %p189 = pneg %p128
      %p190 = scmp.lt.s32.totalorder %s16, 1
      %s191 = scalar_select %p190, %s16, 1
      %s192 = smul.addr %s191, 8
      %s193 = scalar_lea.vmem %s4, %s192
      %p194 = scmp.lt.s32.totalorder %s16, 1
      %s195 = scalar_select %p194, %s16, 1
      %s196 = smul.addr %s195, 16
      %s197 = smul.addr %s196, 8
      %s198 = scalar_lea.vmem %s0, %s197
      %p199 = scmp.lt.s32.totalorder %s16, 1
      %s200 = scalar_select %p199, %s16, 1
      %s201 = smul.addr %s200, 8
      %s202 = scalar_lea.vmem %s3, %s201
      %p203 = scmp.lt.s32.totalorder %s16, 1
      %s204 = scalar_select %p203, %s16, 1
      %s205 = smul.addr %s204, 8
      %s206 = scalar_lea.vmem %s4, %s205
      %v208 = vld [vmem:[%s198] sm:$0xff]
      %v209 = vld [vmem:[%s198 + $0x8] sm:$0xff]
      %v210 = vld [vmem:[%s198 + $0x10] sm:$0xff]
      %v211 = vld [vmem:[%s198 + $0x18] sm:$0xff]
      %v212 = vld [vmem:[%s198 + $0x20] sm:$0xff]
      %v213 = vld [vmem:[%s198 + $0x28] sm:$0xff]
      %v214 = vld [vmem:[%s198 + $0x30] sm:$0xff]
      %v215 = vld [vmem:[%s198 + $0x38] sm:$0xff]
      %v216 = vld [vmem:[%s198 + $0x40] sm:$0xff]
      %v217 = vld [vmem:[%s198 + $0x48] sm:$0xff]
      %v218 = vld [vmem:[%s198 + $0x50] sm:$0xff]
      %v219 = vld [vmem:[%s198 + $0x58] sm:$0xff]
      %v220 = vld [vmem:[%s198 + $0x60] sm:$0xff]
      %v221 = vld [vmem:[%s198 + $0x68] sm:$0xff]
      %v222 = vld [vmem:[%s198 + $0x70] sm:$0xff]
      %v223 = vld [vmem:[%s198 + $0x78] sm:$0xff]
      %240 = vrot.lane.b32.xlu0 %v208, 124
      %v241 = vpop.permute.xlu0 %240
      %242 = vrot.lane.b32.xlu0 %v209, 124
      %v243 = vpop.permute.xlu0 %242
      %244 = vrot.lane.b32.xlu0 %v210, 124
      %v245 = vpop.permute.xlu0 %244
      %246 = vrot.lane.b32.xlu0 %v211, 124
      %v247 = vpop.permute.xlu0 %246
      %248 = vrot.lane.b32.xlu0 %v212, 124
      %v249 = vpop.permute.xlu0 %248
      %250 = vrot.lane.b32.xlu0 %v213, 124
      %v251 = vpop.permute.xlu0 %250
      %252 = vrot.lane.b32.xlu0 %v214, 124
      %v253 = vpop.permute.xlu0 %252
      %254 = vrot.lane.b32.xlu0 %v215, 124
      %v255 = vpop.permute.xlu0 %254
      %256 = vrot.lane.b32.xlu0 %v216, 124
      %v257 = vpop.permute.xlu0 %256
      %258 = vrot.lane.b32.xlu0 %v217, 124
      %v259 = vpop.permute.xlu0 %258
      %260 = vrot.lane.b32.xlu0 %v218, 124
      %v261 = vpop.permute.xlu0 %260
      %262 = vrot.lane.b32.xlu0 %v219, 124
      %v263 = vpop.permute.xlu0 %262
      %264 = vrot.lane.b32.xlu0 %v220, 124
      %v265 = vpop.permute.xlu0 %264
      %266 = vrot.lane.b32.xlu0 %v221, 124
      %v267 = vpop.permute.xlu0 %266
      %268 = vrot.lane.b32.xlu0 %v222, 124
      %v269 = vpop.permute.xlu0 %268
      %270 = vrot.lane.b32.xlu0 %v223, 124
      %v271 = vpop.permute.xlu0 %270
      %v288 = vmax.f32 %v208, %v241
      %v289 = vmax.f32 %v209, %v243
      %v290 = vmax.f32 %v210, %v245
      %v291 = vmax.f32 %v211, %v247
      %v292 = vmax.f32 %v212, %v249
      %v293 = vmax.f32 %v213, %v251
      %v294 = vmax.f32 %v214, %v253
      %v295 = vmax.f32 %v215, %v255
      %v296 = vmax.f32 %v216, %v257
      %v297 = vmax.f32 %v217, %v259
      %v298 = vmax.f32 %v218, %v261
      %v299 = vmax.f32 %v219, %v263
      %v300 = vmax.f32 %v220, %v265
      %v301 = vmax.f32 %v221, %v267
      %v302 = vmax.f32 %v222, %v269
      %v303 = vmax.f32 %v223, %v271
      %v304 = vmax.f32 %v288, %v289
      %v305 = vmax.f32 %v290, %v291
      %v306 = vmax.f32 %v292, %v293
      %v307 = vmax.f32 %v294, %v295
      %v308 = vmax.f32 %v296, %v297
      %v309 = vmax.f32 %v298, %v299
      %v310 = vmax.f32 %v300, %v301
      %v311 = vmax.f32 %v302, %v303
      %vm312 = vcmask 31744
      %313 = vst.msk [vmem:[#allocation2] sm:$0xff] %vm312, 0.0
      %vm314 = vcmask 25600
      %315 = vst.msk [vmem:[#allocation2 + $0x8] sm:$0x3] %vm314, 0.0
      %s316 = scalar_lea.vmem [#allocation2], 144
      %317 = vst.msk [vmem:[%s316] sm:$0xff] %vm312, 0.0
      %318 = vst.msk [vmem:[%s316 + $0x8] sm:$0x3] %vm314, 0.0
      %s319 = scalar_lea.vmem [#allocation2], 16
      %320 = vst.msk [vmem:[%s319 + $0x1] sm:$0xff] %vm312, %v304
      %321 = vst.msk [vmem:[%s319 + $0x11] sm:$0xff] %vm312, %v305
      %322 = vst.msk [vmem:[%s319 + $0x21] sm:$0xff] %vm312, %v306
      %323 = vst.msk [vmem:[%s319 + $0x31] sm:$0xff] %vm312, %v307
      %324 = vst.msk [vmem:[%s319 + $0x41] sm:$0xff] %vm312, %v308
      %325 = vst.msk [vmem:[%s319 + $0x51] sm:$0xff] %vm312, %v309
      %326 = vst.msk [vmem:[%s319 + $0x61] sm:$0xff] %vm312, %v310
      %327 = vst.msk [vmem:[%s319 + $0x71] sm:$0xff] %vm312, %v311
      %vm328 = vcmask 31751
      %329 = vst.msk [vmem:[%s319 - $0x7] sm:$0x80] %vm328, %v304
      %330 = vst.msk [vmem:[%s319 + $0x9] sm:$0x80] %vm328, %v305
      %331 = vst.msk [vmem:[%s319 + $0x19] sm:$0x80] %vm328, %v306
      %332 = vst.msk [vmem:[%s319 + $0x29] sm:$0x80] %vm328, %v307
      %333 = vst.msk [vmem:[%s319 + $0x39] sm:$0x80] %vm328, %v308
      %334 = vst.msk [vmem:[%s319 + $0x49] sm:$0x80] %vm328, %v309
      %335 = vst.msk [vmem:[%s319 + $0x59] sm:$0x80] %vm328, %v310
      %336 = vst.msk [vmem:[%s319 + $0x69] sm:$0x80] %vm328, %v311
      %vm337 = vcmask 24576
      %338 = vst.msk [vmem:[%s319 + $0x9] sm:$0x1] %vm337, %v304
      %339 = vst.msk [vmem:[%s319 + $0x19] sm:$0x1] %vm337, %v305
      %340 = vst.msk [vmem:[%s319 + $0x29] sm:$0x1] %vm337, %v306
      %341 = vst.msk [vmem:[%s319 + $0x39] sm:$0x1] %vm337, %v307
      %342 = vst.msk [vmem:[%s319 + $0x49] sm:$0x1] %vm337, %v308
      %343 = vst.msk [vmem:[%s319 + $0x59] sm:$0x1] %vm337, %v309
      %344 = vst.msk [vmem:[%s319 + $0x69] sm:$0x1] %vm337, %v310
      %345 = vst.msk [vmem:[%s319 + $0x79] sm:$0x1] %vm337, %v311
      %v346 = vld [vmem:[#allocation2] sm:$0xff]
      %v347 = vld [vmem:[#allocation2 + $0x10] sm:$0xff]
      %v348 = vld [vmem:[#allocation2 + $0x20] sm:$0xff]
      %v349 = vld [vmem:[#allocation2 + $0x30] sm:$0xff]
      %v350 = vld [vmem:[#allocation2 + $0x40] sm:$0xff]
      %v351 = vld [vmem:[#allocation2 + $0x50] sm:$0xff]
      %v352 = vld [vmem:[#allocation2 + $0x60] sm:$0xff]
      %v353 = vld [vmem:[#allocation2 + $0x70] sm:$0xff]
      %v354 = vpack.c.bf16 %v347, %v346
      %v355 = vpack.c.bf16 %v349, %v348
      %v356 = vpack.c.bf16 %v351, %v350
      %v357 = vpack.c.bf16 %v353, %v352
      %v358 = vunpack.c.l.bf16 %v354
      %v359 = vunpack.c.h.bf16 %v354
      %v360 = vunpack.c.l.bf16 %v355
      %v361 = vunpack.c.h.bf16 %v355
      %v362 = vunpack.c.l.bf16 %v356
      %v363 = vunpack.c.h.bf16 %v356
      %v364 = vunpack.c.l.bf16 %v357
      %v365 = vunpack.c.h.bf16 %v357
      %v366 = vsub.f32 %v346, %v358
      %v367 = vsub.f32 %v347, %v359
      %v368 = vsub.f32 %v348, %v360
      %v369 = vsub.f32 %v349, %v361
      %v370 = vsub.f32 %v350, %v362
      %v371 = vsub.f32 %v351, %v363
      %v372 = vsub.f32 %v352, %v364
      %v373 = vsub.f32 %v353, %v365
      %v374 = vpack.c.bf16 %v367, %v366
      %v375 = vpack.c.bf16 %v369, %v368
      %v376 = vpack.c.bf16 %v371, %v370
      %v377 = vpack.c.bf16 %v373, %v372
      %v378 = vld [vmem:[%s1] sm:$0xf]
      %v379 = vld [vmem:[%s2] sm:$0xf]
      %v381 = vsel %vm312, %v378, 0
      %v384 = vsel %vm312, %v374, 0
      %v387 = vsel %vm312, %v375, 0
      %v390 = vsel %vm312, %v376, 0
      %v393 = vsel %vm312, %v377, 0
      %395 = vmatprep.subr.bf16.mxu0 0
      %396 = vmatpush1.bf16.xpose.msra.mxu0 %v384
      %397 = vmatprep.subr.bf16.mxu0 0
      %398 = vmatpush1.bf16.xpose.msra.mxu0 %v387
      %399 = vmatprep.subr.bf16.mxu0 0
      %400 = vmatpush1.bf16.xpose.msra.mxu0 %v390
      %401 = vmatprep.subr.bf16.mxu0 0
      %402 = vmatpush1.bf16.xpose.msra.mxu0 %v393
      %403 = vmatprep.subr.bf16.mxu0 0
      %404 = vmatpush1.bf16.xpose.msra.mxu0 0
      %405 = vmatprep.subr.bf16.mxu0 0
      %406 = vmatpush1.bf16.xpose.msra.mxu0 0
      %407 = vmatprep.subr.bf16.mxu0 0
      %408 = vmatpush1.bf16.xpose.msra.mxu0 0
      %409 = vmatprep.subr.bf16.mxu0 0
      %410 = vmatpush1.bf16.xpose.msra.mxu0 0
      %411 = vmatprep.subr.bf16.mxu0 0
      %412 = vmatpush1.bf16.xpose.msra.mxu0 0
      %413 = vmatprep.subr.bf16.mxu0 0
      %414 = vmatpush1.bf16.xpose.msra.mxu0 0
      %415 = vmatprep.subr.bf16.mxu0 0
      %416 = vmatpush1.bf16.xpose.msra.mxu0 0
      %417 = vmatprep.subr.bf16.mxu0 0
      %418 = vmatpush1.bf16.xpose.msra.mxu0 0
      %419 = vmatprep.subr.bf16.mxu0 0
      %420 = vmatpush1.bf16.xpose.msra.mxu0 0
      %421 = vmatprep.subr.bf16.mxu0 0
      %422 = vmatpush1.bf16.xpose.msra.mxu0 0
      %423 = vmatprep.subr.bf16.mxu0 0
      %424 = vmatpush1.bf16.xpose.msra.mxu0 0
      %425 = vmatprep.subr.bf16.mxu0 0
      %426 = vmatpush1.bf16.xpose.msra.mxu0 0
      %427 = vmatprep.mubr.bf16.mxu0 0
      %428 = vmatmul.mubr.bf16.gmra.mrb[0].mxu0 %v381
      %v429 = vpop.f32.mrb[0].mxu0
      %v430 = vadd.f32 0.0, %v429
      %v431 = vpop.f32.mrb[0].mxu0
      %v432 = vpop.f32.mrb[0].mxu0
      %v433 = vpop.f32.mrb[0].mxu0
      %434 = vdwg.mxu0
      %v436 = vsel %vm312, %v354, 0
      %v439 = vsel %vm312, %v355, 0
      %v442 = vsel %vm312, %v356, 0
      %v445 = vsel %vm312, %v357, 0
      %447 = vmatprep.subr.bf16.mxu0 0
      %448 = vmatpush1.bf16.xpose.msra.mxu0 %v436
      %449 = vmatprep.subr.bf16.mxu0 0
      %450 = vmatpush1.bf16.xpose.msra.mxu0 %v439
      %451 = vmatprep.subr.bf16.mxu0 0
      %452 = vmatpush1.bf16.xpose.msra.mxu0 %v442
      %453 = vmatprep.subr.bf16.mxu0 0
      %454 = vmatpush1.bf16.xpose.msra.mxu0 %v445
      %455 = vmatprep.subr.bf16.mxu0 0
      %456 = vmatpush1.bf16.xpose.msra.mxu0 0
      %457 = vmatprep.subr.bf16.mxu0 0
      %458 = vmatpush1.bf16.xpose.msra.mxu0 0
      %459 = vmatprep.subr.bf16.mxu0 0
      %460 = vmatpush1.bf16.xpose.msra.mxu0 0
      %461 = vmatprep.subr.bf16.mxu0 0
      %462 = vmatpush1.bf16.xpose.msra.mxu0 0
      %463 = vmatprep.subr.bf16.mxu0 0
      %464 = vmatpush1.bf16.xpose.msra.mxu0 0
      %465 = vmatprep.subr.bf16.mxu0 0
      %466 = vmatpush1.bf16.xpose.msra.mxu0 0
      %467 = vmatprep.subr.bf16.mxu0 0
      %468 = vmatpush1.bf16.xpose.msra.mxu0 0
      %469 = vmatprep.subr.bf16.mxu0 0
      %470 = vmatpush1.bf16.xpose.msra.mxu0 0
      %471 = vmatprep.subr.bf16.mxu0 0
      %472 = vmatpush1.bf16.xpose.msra.mxu0 0
      %473 = vmatprep.subr.bf16.mxu0 0
      %474 = vmatpush1.bf16.xpose.msra.mxu0 0
      %475 = vmatprep.subr.bf16.mxu0 0
      %476 = vmatpush1.bf16.xpose.msra.mxu0 0
      %477 = vmatprep.subr.bf16.mxu0 0
      %478 = vmatpush1.bf16.xpose.msra.mxu0 0
      %479 = vmatprep.mubr.bf16.mxu0 0
      %480 = vmatmul.mubr.bf16.gmra.mrb[0].mxu0 %v381
      %v481 = vpop.f32.mrb[0].mxu0
      %v482 = vadd.f32 %v430, %v481
      %v483 = vpop.f32.mrb[0].mxu0
      %v484 = vpop.f32.mrb[0].mxu0
      %v485 = vpop.f32.mrb[0].mxu0
      %486 = vdwg.mxu0
      %v488 = vsel %vm312, %v379, 0
      %490 = vmatprep.subr.bf16.mxu0 0
      %491 = vmatpush1.bf16.xpose.msra.mxu0 %v436
      %492 = vmatprep.subr.bf16.mxu0 0
      %493 = vmatpush1.bf16.xpose.msra.mxu0 %v439
      %494 = vmatprep.subr.bf16.mxu0 0
      %495 = vmatpush1.bf16.xpose.msra.mxu0 %v442
      %496 = vmatprep.subr.bf16.mxu0 0
      %497 = vmatpush1.bf16.xpose.msra.mxu0 %v445
      %498 = vmatprep.subr.bf16.mxu0 0
      %499 = vmatpush1.bf16.xpose.msra.mxu0 0
      %500 = vmatprep.subr.bf16.mxu0 0
      %501 = vmatpush1.bf16.xpose.msra.mxu0 0
      %502 = vmatprep.subr.bf16.mxu0 0
      %503 = vmatpush1.bf16.xpose.msra.mxu0 0
      %504 = vmatprep.subr.bf16.mxu0 0
      %505 = vmatpush1.bf16.xpose.msra.mxu0 0
      %506 = vmatprep.subr.bf16.mxu0 0
      %507 = vmatpush1.bf16.xpose.msra.mxu0 0
      %508 = vmatprep.subr.bf16.mxu0 0
      %509 = vmatpush1.bf16.xpose.msra.mxu0 0
      %510 = vmatprep.subr.bf16.mxu0 0
      %511 = vmatpush1.bf16.xpose.msra.mxu0 0
      %512 = vmatprep.subr.bf16.mxu0 0
      %513 = vmatpush1.bf16.xpose.msra.mxu0 0
      %514 = vmatprep.subr.bf16.mxu0 0
      %515 = vmatpush1.bf16.xpose.msra.mxu0 0
      %516 = vmatprep.subr.bf16.mxu0 0
      %517 = vmatpush1.bf16.xpose.msra.mxu0 0
      %518 = vmatprep.subr.bf16.mxu0 0
      %519 = vmatpush1.bf16.xpose.msra.mxu0 0
      %520 = vmatprep.subr.bf16.mxu0 0
      %521 = vmatpush1.bf16.xpose.msra.mxu0 0
      %522 = vmatprep.mubr.bf16.mxu0 0
      %523 = vmatmul.mubr.bf16.gmra.mrb[0].mxu0 %v488
      %v524 = vpop.f32.mrb[0].mxu0
      %v525 = vadd.f32 0.0, %v524
      %v526 = vpop.f32.mrb[0].mxu0
      %v527 = vpop.f32.mrb[0].mxu0
      %v528 = vpop.f32.mrb[0].mxu0
      %529 = vdwg.mxu0
      %v530 = vadd.f32 %v482, %v525
      %v531 = vld [vmem:[#allocation2 + $0x1] sm:$0xff]
      %v532 = vld [vmem:[#allocation2 + $0x11] sm:$0xff]
      %v533 = vld [vmem:[#allocation2 + $0x21] sm:$0xff]
      %v534 = vld [vmem:[#allocation2 + $0x31] sm:$0xff]
      %v535 = vld [vmem:[#allocation2 + $0x41] sm:$0xff]
      %v536 = vld [vmem:[#allocation2 + $0x51] sm:$0xff]
      %v537 = vld [vmem:[#allocation2 + $0x61] sm:$0xff]
      %v538 = vld [vmem:[#allocation2 + $0x71] sm:$0xff]
      %v539 = vpack.c.bf16 %v532, %v531
      %v540 = vpack.c.bf16 %v534, %v533
      %v541 = vpack.c.bf16 %v536, %v535
      %v542 = vpack.c.bf16 %v538, %v537
      %v543 = vunpack.c.l.bf16 %v539
      %v544 = vunpack.c.h.bf16 %v539
      %v545 = vunpack.c.l.bf16 %v540
      %v546 = vunpack.c.h.bf16 %v540
      %v547 = vunpack.c.l.bf16 %v541
      %v548 = vunpack.c.h.bf16 %v541
      %v549 = vunpack.c.l.bf16 %v542
      %v550 = vunpack.c.h.bf16 %v542
      %v551 = vsub.f32 %v531, %v543
      %v552 = vsub.f32 %v532, %v544
      %v553 = vsub.f32 %v533, %v545
      %v554 = vsub.f32 %v534, %v546
      %v555 = vsub.f32 %v535, %v547
      %v556 = vsub.f32 %v536, %v548
      %v557 = vsub.f32 %v537, %v549
      %v558 = vsub.f32 %v538, %v550
      %v559 = vpack.c.bf16 %v552, %v551
      %v560 = vpack.c.bf16 %v554, %v553
      %v561 = vpack.c.bf16 %v556, %v555
      %v562 = vpack.c.bf16 %v558, %v557
      %s563 = scalar_lea.vmem %s1, 4
      %v564 = vld [vmem:[%s563] sm:$0xf]
      %s565 = scalar_lea.vmem %s2, 4
      %v566 = vld [vmem:[%s565] sm:$0xf]
      %v568 = vsel %vm312, %v564, 0
      %v571 = vsel %vm312, %v539, 0
      %v574 = vsel %vm312, %v540, 0
      %v577 = vsel %vm312, %v541, 0
      %v580 = vsel %vm312, %v542, 0
      %582 = vmatprep.subr.bf16.mxu0 0
      %583 = vmatpush1.bf16.xpose.msra.mxu0 %v571
      %584 = vmatprep.subr.bf16.mxu0 0
      %585 = vmatpush1.bf16.xpose.msra.mxu0 %v574
      %586 = vmatprep.subr.bf16.mxu0 0
      %587 = vmatpush1.bf16.xpose.msra.mxu0 %v577
      %588 = vmatprep.subr.bf16.mxu0 0
      %589 = vmatpush1.bf16.xpose.msra.mxu0 %v580
      %590 = vmatprep.subr.bf16.mxu0 0
      %591 = vmatpush1.bf16.xpose.msra.mxu0 0
      %592 = vmatprep.subr.bf16.mxu0 0
      %593 = vmatpush1.bf16.xpose.msra.mxu0 0
      %594 = vmatprep.subr.bf16.mxu0 0
      %595 = vmatpush1.bf16.xpose.msra.mxu0 0
      %596 = vmatprep.subr.bf16.mxu0 0
      %597 = vmatpush1.bf16.xpose.msra.mxu0 0
      %598 = vmatprep.subr.bf16.mxu0 0
      %599 = vmatpush1.bf16.xpose.msra.mxu0 0
      %600 = vmatprep.subr.bf16.mxu0 0
      %601 = vmatpush1.bf16.xpose.msra.mxu0 0
      %602 = vmatprep.subr.bf16.mxu0 0
      %603 = vmatpush1.bf16.xpose.msra.mxu0 0
      %604 = vmatprep.subr.bf16.mxu0 0
      %605 = vmatpush1.bf16.xpose.msra.mxu0 0
      %606 = vmatprep.subr.bf16.mxu0 0
      %607 = vmatpush1.bf16.xpose.msra.mxu0 0
      %608 = vmatprep.subr.bf16.mxu0 0
      %609 = vmatpush1.bf16.xpose.msra.mxu0 0
      %610 = vmatprep.subr.bf16.mxu0 0
      %611 = vmatpush1.bf16.xpose.msra.mxu0 0
      %612 = vmatprep.subr.bf16.mxu0 0
      %613 = vmatpush1.bf16.xpose.msra.mxu0 0
      %614 = vmatprep.mubr.bf16.mxu0 0
      %615 = vmatmul.mubr.bf16.gmra.mrb[0].mxu0 %v568
      %v616 = vpop.f32.mrb[0].mxu0
      %v617 = vadd.f32 0.0, %v616
      %v618 = vpop.f32.mrb[0].mxu0
      %v619 = vpop.f32.mrb[0].mxu0
      %v620 = vpop.f32.mrb[0].mxu0
      %621 = vdwg.mxu0
      %v622 = vadd.f32 %v530, %v617
      %v624 = vsel %vm312, %v559, 0
      %v627 = vsel %vm312, %v560, 0
      %v630 = vsel %vm312, %v561, 0
      %v633 = vsel %vm312, %v562, 0
      %635 = vmatprep.subr.bf16.mxu0 0
      %636 = vmatpush1.bf16.xpose.msra.mxu0 %v624
      %637 = vmatprep.subr.bf16.mxu0 0
      %638 = vmatpush1.bf16.xpose.msra.mxu0 %v627
      %639 = vmatprep.subr.bf16.mxu0 0
      %640 = vmatpush1.bf16.xpose.msra.mxu0 %v630
      %641 = vmatprep.subr.bf16.mxu0 0
      %642 = vmatpush1.bf16.xpose.msra.mxu0 %v633
      %643 = vmatprep.subr.bf16.mxu0 0
      %644 = vmatpush1.bf16.xpose.msra.mxu0 0
      %645 = vmatprep.subr.bf16.mxu0 0
      %646 = vmatpush1.bf16.xpose.msra.mxu0 0
      %647 = vmatprep.subr.bf16.mxu0 0
      %648 = vmatpush1.bf16.xpose.msra.mxu0 0
      %649 = vmatprep.subr.bf16.mxu0 0
      %650 = vmatpush1.bf16.xpose.msra.mxu0 0
      %651 = vmatprep.subr.bf16.mxu0 0
      %652 = vmatpush1.bf16.xpose.msra.mxu0 0
      %653 = vmatprep.subr.bf16.mxu0 0
      %654 = vmatpush1.bf16.xpose.msra.mxu0 0
      %655 = vmatprep.subr.bf16.mxu0 0
      %656 = vmatpush1.bf16.xpose.msra.mxu0 0
      %657 = vmatprep.subr.bf16.mxu0 0
      %658 = vmatpush1.bf16.xpose.msra.mxu0 0
      %659 = vmatprep.subr.bf16.mxu0 0
      %660 = vmatpush1.bf16.xpose.msra.mxu0 0
      %661 = vmatprep.subr.bf16.mxu0 0
      %662 = vmatpush1.bf16.xpose.msra.mxu0 0
      %663 = vmatprep.subr.bf16.mxu0 0
      %664 = vmatpush1.bf16.xpose.msra.mxu0 0
      %665 = vmatprep.subr.bf16.mxu0 0
      %666 = vmatpush1.bf16.xpose.msra.mxu0 0
      %667 = vmatprep.mubr.bf16.mxu0 0
      %668 = vmatmul.mubr.bf16.gmra.mrb[0].mxu0 %v568
      %v669 = vpop.f32.mrb[0].mxu0
      %v670 = vadd.f32 0.0, %v669
      %v671 = vpop.f32.mrb[0].mxu0
      %v672 = vpop.f32.mrb[0].mxu0
      %v673 = vpop.f32.mrb[0].mxu0
      %674 = vdwg.mxu0
      %v675 = vadd.f32 %v622, %v670
      %v677 = vsel %vm312, %v566, 0
      %679 = vmatprep.subr.bf16.mxu0 0
      %680 = vmatpush1.bf16.xpose.msra.mxu0 %v571
      %681 = vmatprep.subr.bf16.mxu0 0
      %682 = vmatpush1.bf16.xpose.msra.mxu0 %v574
      %683 = vmatprep.subr.bf16.mxu0 0
      %684 = vmatpush1.bf16.xpose.msra.mxu0 %v577
      %685 = vmatprep.subr.bf16.mxu0 0
      %686 = vmatpush1.bf16.xpose.msra.mxu0 %v580
      %687 = vmatprep.subr.bf16.mxu0 0
      %688 = vmatpush1.bf16.xpose.msra.mxu0 0
      %689 = vmatprep.subr.bf16.mxu0 0
      %690 = vmatpush1.bf16.xpose.msra.mxu0 0
      %691 = vmatprep.subr.bf16.mxu0 0
      %692 = vmatpush1.bf16.xpose.msra.mxu0 0
      %693 = vmatprep.subr.bf16.mxu0 0
      %694 = vmatpush1.bf16.xpose.msra.mxu0 0
      %695 = vmatprep.subr.bf16.mxu0 0
      %696 = vmatpush1.bf16.xpose.msra.mxu0 0
      %697 = vmatprep.subr.bf16.mxu0 0
      %698 = vmatpush1.bf16.xpose.msra.mxu0 0
      %699 = vmatprep.subr.bf16.mxu0 0
      %700 = vmatpush1.bf16.xpose.msra.mxu0 0
      %701 = vmatprep.subr.bf16.mxu0 0
      %702 = vmatpush1.bf16.xpose.msra.mxu0 0
      %703 = vmatprep.subr.bf16.mxu0 0
      %704 = vmatpush1.bf16.xpose.msra.mxu0 0
      %705 = vmatprep.subr.bf16.mxu0 0
      %706 = vmatpush1.bf16.xpose.msra.mxu0 0
      %707 = vmatprep.subr.bf16.mxu0 0
      %708 = vmatpush1.bf16.xpose.msra.mxu0 0
      %709 = vmatprep.subr.bf16.mxu0 0
      %710 = vmatpush1.bf16.xpose.msra.mxu0 0
      %711 = vmatprep.mubr.bf16.mxu0 0
      %712 = vmatmul.mubr.bf16.gmra.mrb[0].mxu0 %v677
      %v713 = vpop.f32.mrb[0].mxu0
      %v714 = vadd.f32 0.0, %v713
      %v715 = vpop.f32.mrb[0].mxu0
      %v716 = vpop.f32.mrb[0].mxu0
      %v717 = vpop.f32.mrb[0].mxu0
      %718 = vdwg.mxu0
      %v719 = vadd.f32 %v675, %v714
      %v720 = vld [vmem:[#allocation2 + $0x2] sm:$0xff]
      %v721 = vld [vmem:[#allocation2 + $0x12] sm:$0xff]
      %v722 = vld [vmem:[#allocation2 + $0x22] sm:$0xff]
      %v723 = vld [vmem:[#allocation2 + $0x32] sm:$0xff]
      %v724 = vld [vmem:[#allocation2 + $0x42] sm:$0xff]
      %v725 = vld [vmem:[#allocation2 + $0x52] sm:$0xff]
      %v726 = vld [vmem:[#allocation2 + $0x62] sm:$0xff]
      %v727 = vld [vmem:[#allocation2 + $0x72] sm:$0xff]
      %v728 = vpack.c.bf16 %v721, %v720
      %v729 = vpack.c.bf16 %v723, %v722
      %v730 = vpack.c.bf16 %v725, %v724
      %v731 = vpack.c.bf16 %v727, %v726
      %v732 = vunpack.c.l.bf16 %v728
      %v733 = vunpack.c.h.bf16 %v728
      %v734 = vunpack.c.l.bf16 %v729
      %v735 = vunpack.c.h.bf16 %v729
      %v736 = vunpack.c.l.bf16 %v730
      %v737 = vunpack.c.h.bf16 %v730
      %v738 = vunpack.c.l.bf16 %v731
      %v739 = vunpack.c.h.bf16 %v731
      %v740 = vsub.f32 %v720, %v732
      %v741 = vsub.f32 %v721, %v733
      %v742 = vsub.f32 %v722, %v734
      %v743 = vsub.f32 %v723, %v735
      %v744 = vsub.f32 %v724, %v736
      %v745 = vsub.f32 %v725, %v737
      %v746 = vsub.f32 %v726, %v738
      %v747 = vsub.f32 %v727, %v739
      %v748 = vpack.c.bf16 %v741, %v740
      %v749 = vpack.c.bf16 %v743, %v742
      %v750 = vpack.c.bf16 %v745, %v744
      %v751 = vpack.c.bf16 %v747, %v746
      %s752 = scalar_lea.vmem %s1, 8
      %v753 = vld [vmem:[%s752] sm:$0xf]
      %s754 = scalar_lea.vmem %s2, 8
      %v755 = vld [vmem:[%s754] sm:$0xf]
      %v757 = vsel %vm312, %v753, 0
      %v760 = vsel %vm312, %v728, 0
      %v763 = vsel %vm312, %v729, 0
      %v766 = vsel %vm312, %v730, 0
      %v769 = vsel %vm312, %v731, 0
      %771 = vmatprep.subr.bf16.mxu0 0
      %772 = vmatpush1.bf16.xpose.msra.mxu0 %v760
      %773 = vmatprep.subr.bf16.mxu0 0
      %774 = vmatpush1.bf16.xpose.msra.mxu0 %v763
      %775 = vmatprep.subr.bf16.mxu0 0
      %776 = vmatpush1.bf16.xpose.msra.mxu0 %v766
      %777 = vmatprep.subr.bf16.mxu0 0
      %778 = vmatpush1.bf16.xpose.msra.mxu0 %v769
      %779 = vmatprep.subr.bf16.mxu0 0
      %780 = vmatpush1.bf16.xpose.msra.mxu0 0
      %781 = vmatprep.subr.bf16.mxu0 0
      %782 = vmatpush1.bf16.xpose.msra.mxu0 0
      %783 = vmatprep.subr.bf16.mxu0 0
      %784 = vmatpush1.bf16.xpose.msra.mxu0 0
      %785 = vmatprep.subr.bf16.mxu0 0
      %786 = vmatpush1.bf16.xpose.msra.mxu0 0
      %787 = vmatprep.subr.bf16.mxu0 0
      %788 = vmatpush1.bf16.xpose.msra.mxu0 0
      %789 = vmatprep.subr.bf16.mxu0 0
      %790 = vmatpush1.bf16.xpose.msra.mxu0 0
      %791 = vmatprep.subr.bf16.mxu0 0
      %792 = vmatpush1.bf16.xpose.msra.mxu0 0
      %793 = vmatprep.subr.bf16.mxu0 0
      %794 = vmatpush1.bf16.xpose.msra.mxu0 0
      %795 = vmatprep.subr.bf16.mxu0 0
      %796 = vmatpush1.bf16.xpose.msra.mxu0 0
      %797 = vmatprep.subr.bf16.mxu0 0
      %798 = vmatpush1.bf16.xpose.msra.mxu0 0
      %799 = vmatprep.subr.bf16.mxu0 0
      %800 = vmatpush1.bf16.xpose.msra.mxu0 0
      %801 = vmatprep.subr.bf16.mxu0 0
      %802 = vmatpush1.bf16.xpose.msra.mxu0 0
      %803 = vmatprep.mubr.bf16.mxu0 0
      %804 = vmatmul.mubr.bf16.gmra.mrb[0].mxu0 %v757
      %v805 = vpop.f32.mrb[0].mxu0
      %v806 = vadd.f32 0.0, %v805
      %v807 = vpop.f32.mrb[0].mxu0
      %v808 = vpop.f32.mrb[0].mxu0
      %v809 = vpop.f32.mrb[0].mxu0
      %810 = vdwg.mxu0
      %v811 = vadd.f32 %v719, %v806
      %v813 = vsel %vm312, %v748, 0
      %v816 = vsel %vm312, %v749, 0
      %v819 = vsel %vm312, %v750, 0
      %v822 = vsel %vm312, %v751, 0
      %824 = vmatprep.subr.bf16.mxu0 0
      %825 = vmatpush1.bf16.xpose.msra.mxu0 %v813
      %826 = vmatprep.subr.bf16.mxu0 0
      %827 = vmatpush1.bf16.xpose.msra.mxu0 %v816
      %828 = vmatprep.subr.bf16.mxu0 0
      %829 = vmatpush1.bf16.xpose.msra.mxu0 %v819
      %830 = vmatprep.subr.bf16.mxu0 0
      %831 = vmatpush1.bf16.xpose.msra.mxu0 %v822
      %832 = vmatprep.subr.bf16.mxu0 0
      %833 = vmatpush1.bf16.xpose.msra.mxu0 0
      %834 = vmatprep.subr.bf16.mxu0 0
      %835 = vmatpush1.bf16.xpose.msra.mxu0 0
      %836 = vmatprep.subr.bf16.mxu0 0
      %837 = vmatpush1.bf16.xpose.msra.mxu0 0
      %838 = vmatprep.subr.bf16.mxu0 0
      %839 = vmatpush1.bf16.xpose.msra.mxu0 0
      %840 = vmatprep.subr.bf16.mxu0 0
      %841 = vmatpush1.bf16.xpose.msra.mxu0 0
      %842 = vmatprep.subr.bf16.mxu0 0
      %843 = vmatpush1.bf16.xpose.msra.mxu0 0
      %844 = vmatprep.subr.bf16.mxu0 0
      %845 = vmatpush1.bf16.xpose.msra.mxu0 0
      %846 = vmatprep.subr.bf16.mxu0 0
      %847 = vmatpush1.bf16.xpose.msra.mxu0 0
      %848 = vmatprep.subr.bf16.mxu0 0
      %849 = vmatpush1.bf16.xpose.msra.mxu0 0
      %850 = vmatprep.subr.bf16.mxu0 0
      %851 = vmatpush1.bf16.xpose.msra.mxu0 0
      %852 = vmatprep.subr.bf16.mxu0 0
      %853 = vmatpush1.bf16.xpose.msra.mxu0 0
      %854 = vmatprep.subr.bf16.mxu0 0
      %855 = vmatpush1.bf16.xpose.msra.mxu0 0
      %856 = vmatprep.mubr.bf16.mxu0 0
      %857 = vmatmul.mubr.bf16.gmra.mrb[0].mxu0 %v757
      %v858 = vpop.f32.mrb[0].mxu0
      %v859 = vadd.f32 0.0, %v858
      %v860 = vpop.f32.mrb[0].mxu0
      %v861 = vpop.f32.mrb[0].mxu0
      %v862 = vpop.f32.mrb[0].mxu0
      %863 = vdwg.mxu0
      %v864 = vadd.f32 %v811, %v859
      %v866 = vsel %vm312, %v755, 0
      %868 = vmatprep.subr.bf16.mxu0 0
      %869 = vmatpush1.bf16.xpose.msra.mxu0 %v760
      %870 = vmatprep.subr.bf16.mxu0 0
      %871 = vmatpush1.bf16.xpose.msra.mxu0 %v763
      %872 = vmatprep.subr.bf16.mxu0 0
      %873 = vmatpush1.bf16.xpose.msra.mxu0 %v766
      %874 = vmatprep.subr.bf16.mxu0 0
      %875 = vmatpush1.bf16.xpose.msra.mxu0 %v769
      %876 = vmatprep.subr.bf16.mxu0 0
      %877 = vmatpush1.bf16.xpose.msra.mxu0 0
      %878 = vmatprep.subr.bf16.mxu0 0
      %879 = vmatpush1.bf16.xpose.msra.mxu0 0
      %880 = vmatprep.subr.bf16.mxu0 0
      %881 = vmatpush1.bf16.xpose.msra.mxu0 0
      %882 = vmatprep.subr.bf16.mxu0 0
      %883 = vmatpush1.bf16.xpose.msra.mxu0 0
      %884 = vmatprep.subr.bf16.mxu0 0
      %885 = vmatpush1.bf16.xpose.msra.mxu0 0
      %886 = vmatprep.subr.bf16.mxu0 0
      %887 = vmatpush1.bf16.xpose.msra.mxu0 0
      %888 = vmatprep.subr.bf16.mxu0 0
      %889 = vmatpush1.bf16.xpose.msra.mxu0 0
      %890 = vmatprep.subr.bf16.mxu0 0
      %891 = vmatpush1.bf16.xpose.msra.mxu0 0
      %892 = vmatprep.subr.bf16.mxu0 0
      %893 = vmatpush1.bf16.xpose.msra.mxu0 0
      %894 = vmatprep.subr.bf16.mxu0 0
      %895 = vmatpush1.bf16.xpose.msra.mxu0 0
      %896 = vmatprep.subr.bf16.mxu0 0
      %897 = vmatpush1.bf16.xpose.msra.mxu0 0
      %898 = vmatprep.subr.bf16.mxu0 0
      %899 = vmatpush1.bf16.xpose.msra.mxu0 0
      %900 = vmatprep.mubr.bf16.mxu0 0
      %901 = vmatmul.mubr.bf16.gmra.mrb[0].mxu0 %v866
      %v902 = vpop.f32.mrb[0].mxu0
      %v903 = vadd.f32 0.0, %v902
      %v904 = vpop.f32.mrb[0].mxu0
      %v905 = vpop.f32.mrb[0].mxu0
      %v906 = vpop.f32.mrb[0].mxu0
      %907 = vdwg.mxu0
      %v908 = vadd.f32 %v864, %v903
      %v909 = vld [vmem:[%s319] sm:$0xff]
      %v910 = vld [vmem:[%s319 + $0x10] sm:$0xff]
      %v911 = vld [vmem:[%s319 + $0x20] sm:$0xff]
      %v912 = vld [vmem:[%s319 + $0x30] sm:$0xff]
      %v913 = vld [vmem:[%s319 + $0x40] sm:$0xff]
      %v914 = vld [vmem:[%s319 + $0x50] sm:$0xff]
      %v915 = vld [vmem:[%s319 + $0x60] sm:$0xff]
      %v916 = vld [vmem:[%s319 + $0x70] sm:$0xff]
      %v917 = vpack.c.bf16 %v910, %v909
      %v918 = vpack.c.bf16 %v912, %v911
      %v919 = vpack.c.bf16 %v914, %v913
      %v920 = vpack.c.bf16 %v916, %v915
      %v921 = vunpack.c.l.bf16 %v917
      %v922 = vunpack.c.h.bf16 %v917
      %v923 = vunpack.c.l.bf16 %v918
      %v924 = vunpack.c.h.bf16 %v918
      %v925 = vunpack.c.l.bf16 %v919
      %v926 = vunpack.c.h.bf16 %v919
      %v927 = vunpack.c.l.bf16 %v920
      %v928 = vunpack.c.h.bf16 %v920
      %v929 = vsub.f32 %v909, %v921
      %v930 = vsub.f32 %v910, %v922
      %v931 = vsub.f32 %v911, %v923
      %v932 = vsub.f32 %v912, %v924
      %v933 = vsub.f32 %v913, %v925
      %v934 = vsub.f32 %v914, %v926
      %v935 = vsub.f32 %v915, %v927
      %v936 = vsub.f32 %v916, %v928
      %v937 = vpack.c.bf16 %v930, %v929
      %v938 = vpack.c.bf16 %v932, %v931
      %v939 = vpack.c.bf16 %v934, %v933
      %v940 = vpack.c.bf16 %v936, %v935
      %s941 = scalar_lea.vmem %s1, 12
      %v942 = vld [vmem:[%s941] sm:$0xf]
      %s943 = scalar_lea.vmem %s2, 12
      %v944 = vld [vmem:[%s943] sm:$0xf]
      %v946 = vsel %vm312, %v942, 0
      %v949 = vsel %vm312, %v917, 0
      %v952 = vsel %vm312, %v918, 0
      %v955 = vsel %vm312, %v919, 0
      %v958 = vsel %vm312, %v920, 0
      %960 = vmatprep.subr.bf16.mxu0 0
      %961 = vmatpush1.bf16.xpose.msra.mxu0 %v949
      %962 = vmatprep.subr.bf16.mxu0 0
      %963 = vmatpush1.bf16.xpose.msra.mxu0 %v952
      %964 = vmatprep.subr.bf16.mxu0 0
      %965 = vmatpush1.bf16.xpose.msra.mxu0 %v955
      %966 = vmatprep.subr.bf16.mxu0 0
      %967 = vmatpush1.bf16.xpose.msra.mxu0 %v958
      %968 = vmatprep.subr.bf16.mxu0 0
      %969 = vmatpush1.bf16.xpose.msra.mxu0 0
      %970 = vmatprep.subr.bf16.mxu0 0
      %971 = vmatpush1.bf16.xpose.msra.mxu0 0
      %972 = vmatprep.subr.bf16.mxu0 0
      %973 = vmatpush1.bf16.xpose.msra.mxu0 0
      %974 = vmatprep.subr.bf16.mxu0 0
      %975 = vmatpush1.bf16.xpose.msra.mxu0 0
      %976 = vmatprep.subr.bf16.mxu0 0
      %977 = vmatpush1.bf16.xpose.msra.mxu0 0
      %978 = vmatprep.subr.bf16.mxu0 0
      %979 = vmatpush1.bf16.xpose.msra.mxu0 0
      %980 = vmatprep.subr.bf16.mxu0 0
      %981 = vmatpush1.bf16.xpose.msra.mxu0 0
      %982 = vmatprep.subr.bf16.mxu0 0
      %983 = vmatpush1.bf16.xpose.msra.mxu0 0
      %984 = vmatprep.subr.bf16.mxu0 0
      %985 = vmatpush1.bf16.xpose.msra.mxu0 0
      %986 = vmatprep.subr.bf16.mxu0 0
      %987 = vmatpush1.bf16.xpose.msra.mxu0 0
      %988 = vmatprep.subr.bf16.mxu0 0
      %989 = vmatpush1.bf16.xpose.msra.mxu0 0
      %990 = vmatprep.subr.bf16.mxu0 0
      %991 = vmatpush1.bf16.xpose.msra.mxu0 0
      %992 = vmatprep.mubr.bf16.mxu0 0
      %993 = vmatmul.mubr.bf16.gmra.mrb[0].mxu0 %v946
      %v994 = vpop.f32.mrb[0].mxu0
      %v995 = vadd.f32 0.0, %v994
      %v996 = vpop.f32.mrb[0].mxu0
      %v997 = vpop.f32.mrb[0].mxu0
      %v998 = vpop.f32.mrb[0].mxu0
      %999 = vdwg.mxu0
      %v1000 = vadd.f32 %v908, %v995
      %v1002 = vsel %vm312, %v937, 0
      %v1005 = vsel %vm312, %v938, 0
      %v1008 = vsel %vm312, %v939, 0
      %v1011 = vsel %vm312, %v940, 0
      %1013 = vmatprep.subr.bf16.mxu0 0
      %1014 = vmatpush1.bf16.xpose.msra.mxu0 %v1002
      %1015 = vmatprep.subr.bf16.mxu0 0
      %1016 = vmatpush1.bf16.xpose.msra.mxu0 %v1005
      %1017 = vmatprep.subr.bf16.mxu0 0
      %1018 = vmatpush1.bf16.xpose.msra.mxu0 %v1008
      %1019 = vmatprep.subr.bf16.mxu0 0
      %1020 = vmatpush1.bf16.xpose.msra.mxu0 %v1011
      %1021 = vmatprep.subr.bf16.mxu0 0
      %1022 = vmatpush1.bf16.xpose.msra.mxu0 0
      %1023 = vmatprep.subr.bf16.mxu0 0
      %1024 = vmatpush1.bf16.xpose.msra.mxu0 0
      %1025 = vmatprep.subr.bf16.mxu0 0
      %1026 = vmatpush1.bf16.xpose.msra.mxu0 0
      %1027 = vmatprep.subr.bf16.mxu0 0
      %1028 = vmatpush1.bf16.xpose.msra.mxu0 0
      %1029 = vmatprep.subr.bf16.mxu0 0
      %1030 = vmatpush1.bf16.xpose.msra.mxu0 0
      %1031 = vmatprep.subr.bf16.mxu0 0
      %1032 = vmatpush1.bf16.xpose.msra.mxu0 0
      %1033 = vmatprep.subr.bf16.mxu0 0
      %1034 = vmatpush1.bf16.xpose.msra.mxu0 0
      %1035 = vmatprep.subr.bf16.mxu0 0
      %1036 = vmatpush1.bf16.xpose.msra.mxu0 0
      %1037 = vmatprep.subr.bf16.mxu0 0
      %1038 = vmatpush1.bf16.xpose.msra.mxu0 0
      %1039 = vmatprep.subr.bf16.mxu0 0
      %1040 = vmatpush1.bf16.xpose.msra.mxu0 0
      %1041 = vmatprep.subr.bf16.mxu0 0
      %1042 = vmatpush1.bf16.xpose.msra.mxu0 0
      %1043 = vmatprep.subr.bf16.mxu0 0
      %1044 = vmatpush1.bf16.xpose.msra.mxu0 0
      %1045 = vmatprep.mubr.bf16.mxu0 0
      %1046 = vmatmul.mubr.bf16.gmra.mrb[0].mxu0 %v946
      %v1047 = vpop.f32.mrb[0].mxu0
      %v1048 = vadd.f32 0.0, %v1047
      %v1049 = vpop.f32.mrb[0].mxu0
      %v1050 = vpop.f32.mrb[0].mxu0
      %v1051 = vpop.f32.mrb[0].mxu0
      %1052 = vdwg.mxu0
      %v1053 = vadd.f32 %v1000, %v1048
      %v1055 = vsel %vm312, %v944, 0
      %1057 = vmatprep.subr.bf16.mxu0 0
      %1058 = vmatpush1.bf16.xpose.msra.mxu0 %v949
      %1059 = vmatprep.subr.bf16.mxu0 0
      %1060 = vmatpush1.bf16.xpose.msra.mxu0 %v952
      %1061 = vmatprep.subr.bf16.mxu0 0
      %1062 = vmatpush1.bf16.xpose.msra.mxu0 %v955
      %1063 = vmatprep.subr.bf16.mxu0 0
      %1064 = vmatpush1.bf16.xpose.msra.mxu0 %v958
      %1065 = vmatprep.subr.bf16.mxu0 0
      %1066 = vmatpush1.bf16.xpose.msra.mxu0 0
      %1067 = vmatprep.subr.bf16.mxu0 0
      %1068 = vmatpush1.bf16.xpose.msra.mxu0 0
      %1069 = vmatprep.subr.bf16.mxu0 0
      %1070 = vmatpush1.bf16.xpose.msra.mxu0 0
      %1071 = vmatprep.subr.bf16.mxu0 0
      %1072 = vmatpush1.bf16.xpose.msra.mxu0 0
      %1073 = vmatprep.subr.bf16.mxu0 0
      %1074 = vmatpush1.bf16.xpose.msra.mxu0 0
      %1075 = vmatprep.subr.bf16.mxu0 0
      %1076 = vmatpush1.bf16.xpose.msra.mxu0 0
      %1077 = vmatprep.subr.bf16.mxu0 0
      %1078 = vmatpush1.bf16.xpose.msra.mxu0 0
      %1079 = vmatprep.subr.bf16.mxu0 0
      %1080 = vmatpush1.bf16.xpose.msra.mxu0 0
      %1081 = vmatprep.subr.bf16.mxu0 0
      %1082 = vmatpush1.bf16.xpose.msra.mxu0 0
      %1083 = vmatprep.subr.bf16.mxu0 0
      %1084 = vmatpush1.bf16.xpose.msra.mxu0 0
      %1085 = vmatprep.subr.bf16.mxu0 0
      %1086 = vmatpush1.bf16.xpose.msra.mxu0 0
      %1087 = vmatprep.subr.bf16.mxu0 0
      %1088 = vmatpush1.bf16.xpose.msra.mxu0 0
      %1089 = vmatprep.mubr.bf16.mxu0 0
      %1090 = vmatmul.mubr.bf16.gmra.mrb[0].mxu0 %v1055
      %v1091 = vpop.f32.mrb[0].mxu0
      %v1092 = vadd.f32 0.0, %v1091
      %v1093 = vpop.f32.mrb[0].mxu0
      %v1094 = vpop.f32.mrb[0].mxu0
      %v1095 = vpop.f32.mrb[0].mxu0
      %1096 = vdwg.mxu0
      %v1097 = vadd.f32 %v1053, %v1092
      %v1098 = vld [vmem:[%s319 + $0x1] sm:$0xff]
      %v1099 = vld [vmem:[%s319 + $0x11] sm:$0xff]
      %v1100 = vld [vmem:[%s319 + $0x21] sm:$0xff]
      %v1101 = vld [vmem:[%s319 + $0x31] sm:$0xff]
      %v1102 = vld [vmem:[%s319 + $0x41] sm:$0xff]
      %v1103 = vld [vmem:[%s319 + $0x51] sm:$0xff]
      %v1104 = vld [vmem:[%s319 + $0x61] sm:$0xff]
      %v1105 = vld [vmem:[%s319 + $0x71] sm:$0xff]
      %v1106 = vpack.c.bf16 %v1099, %v1098
      %v1107 = vpack.c.bf16 %v1101, %v1100
      %v1108 = vpack.c.bf16 %v1103, %v1102
      %v1109 = vpack.c.bf16 %v1105, %v1104
      %v1110 = vunpack.c.l.bf16 %v1106
      %v1111 = vunpack.c.h.bf16 %v1106
      %v1112 = vunpack.c.l.bf16 %v1107
      %v1113 = vunpack.c.h.bf16 %v1107
      %v1114 = vunpack.c.l.bf16 %v1108
      %v1115 = vunpack.c.h.bf16 %v1108
      %v1116 = vunpack.c.l.bf16 %v1109
      %v1117 = vunpack.c.h.bf16 %v1109
      %v1118 = vsub.f32 %v1098, %v1110
      %v1119 = vsub.f32 %v1099, %v1111
      %v1120 = vsub.f32 %v1100, %v1112
      %v1121 = vsub.f32 %v1101, %v1113
      %v1122 = vsub.f32 %v1102, %v1114
      %v1123 = vsub.f32 %v1103, %v1115
      %v1124 = vsub.f32 %v1104, %v1116
      %v1125 = vsub.f32 %v1105, %v1117
      %v1126 = vpack.c.bf16 %v1119, %v1118
      %v1127 = vpack.c.bf16 %v1121, %v1120
      %v1128 = vpack.c.bf16 %v1123, %v1122
      %v1129 = vpack.c.bf16 %v1125, %v1124
      %s1130 = scalar_lea.vmem %s1, 16
      %v1131 = vld [vmem:[%s1130] sm:$0xf]
      %s1132 = scalar_lea.vmem %s2, 16
      %v1133 = vld [vmem:[%s1132] sm:$0xf]
      %v1135 = vsel %vm312, %v1131, 0
      %v1138 = vsel %vm312, %v1106, 0
      %v1141 = vsel %vm312, %v1107, 0
      %v1144 = vsel %vm312, %v1108, 0
      %v1147 = vsel %vm312, %v1109, 0
      %1149 = vmatprep.subr.bf16.mxu0 0
      %1150 = vmatpush1.bf16.xpose.msra.mxu0 %v1138
      %1151 = vmatprep.subr.bf16.mxu0 0
      %1152 = vmatpush1.bf16.xpose.msra.mxu0 %v1141
      %1153 = vmatprep.subr.bf16.mxu0 0
      %1154 = vmatpush1.bf16.xpose.msra.mxu0 %v1144
      %1155 = vmatprep.subr.bf16.mxu0 0
      %1156 = vmatpush1.bf16.xpose.msra.mxu0 %v1147
      %1157 = vmatprep.subr.bf16.mxu0 0
      %1158 = vmatpush1.bf16.xpose.msra.mxu0 0
      %1159 = vmatprep.subr.bf16.mxu0 0
      %1160 = vmatpush1.bf16.xpose.msra.mxu0 0
      %1161 = vmatprep.subr.bf16.mxu0 0
      %1162 = vmatpush1.bf16.xpose.msra.mxu0 0
      %1163 = vmatprep.subr.bf16.mxu0 0
      %1164 = vmatpush1.bf16.xpose.msra.mxu0 0
      %1165 = vmatprep.subr.bf16.mxu0 0
      %1166 = vmatpush1.bf16.xpose.msra.mxu0 0
      %1167 = vmatprep.subr.bf16.mxu0 0
      %1168 = vmatpush1.bf16.xpose.msra.mxu0 0
      %1169 = vmatprep.subr.bf16.mxu0 0
      %1170 = vmatpush1.bf16.xpose.msra.mxu0 0
      %1171 = vmatprep.subr.bf16.mxu0 0
      %1172 = vmatpush1.bf16.xpose.msra.mxu0 0
      %1173 = vmatprep.subr.bf16.mxu0 0
      %1174 = vmatpush1.bf16.xpose.msra.mxu0 0
      %1175 = vmatprep.subr.bf16.mxu0 0
      %1176 = vmatpush1.bf16.xpose.msra.mxu0 0
      %1177 = vmatprep.subr.bf16.mxu0 0
      %1178 = vmatpush1.bf16.xpose.msra.mxu0 0
      %1179 = vmatprep.subr.bf16.mxu0 0
      %1180 = vmatpush1.bf16.xpose.msra.mxu0 0
      %1181 = vmatprep.mubr.bf16.mxu0 0
      %1182 = vmatmul.mubr.bf16.gmra.mrb[0].mxu0 %v1135
      %v1183 = vpop.f32.mrb[0].mxu0
      %v1184 = vadd.f32 0.0, %v1183
      %v1185 = vpop.f32.mrb[0].mxu0
      %v1186 = vpop.f32.mrb[0].mxu0
      %v1187 = vpop.f32.mrb[0].mxu0
      %1188 = vdwg.mxu0
      %v1189 = vadd.f32 %v1097, %v1184
      %v1191 = vsel %vm312, %v1126, 0
      %v1194 = vsel %vm312, %v1127, 0
      %v1197 = vsel %vm312, %v1128, 0
      %v1200 = vsel %vm312, %v1129, 0
      %1202 = vmatprep.subr.bf16.mxu0 0
      %1203 = vmatpush1.bf16.xpose.msra.mxu0 %v1191
      %1204 = vmatprep.subr.bf16.mxu0 0
      %1205 = vmatpush1.bf16.xpose.msra.mxu0 %v1194
      %1206 = vmatprep.subr.bf16.mxu0 0
      %1207 = vmatpush1.bf16.xpose.msra.mxu0 %v1197
      %1208 = vmatprep.subr.bf16.mxu0 0
      %1209 = vmatpush1.bf16.xpose.msra.mxu0 %v1200
      %1210 = vmatprep.subr.bf16.mxu0 0
      %1211 = vmatpush1.bf16.xpose.msra.mxu0 0
      %1212 = vmatprep.subr.bf16.mxu0 0
      %1213 = vmatpush1.bf16.xpose.msra.mxu0 0
      %1214 = vmatprep.subr.bf16.mxu0 0
      %1215 = vmatpush1.bf16.xpose.msra.mxu0 0
      %1216 = vmatprep.subr.bf16.mxu0 0
      %1217 = vmatpush1.bf16.xpose.msra.mxu0 0
      %1218 = vmatprep.subr.bf16.mxu0 0
      %1219 = vmatpush1.bf16.xpose.msra.mxu0 0
      %1220 = vmatprep.subr.bf16.mxu0 0
      %1221 = vmatpush1.bf16.xpose.msra.mxu0 0
      %1222 = vmatprep.subr.bf16.mxu0 0
      %1223 = vmatpush1.bf16.xpose.msra.mxu0 0
      %1224 = vmatprep.subr.bf16.mxu0 0
      %1225 = vmatpush1.bf16.xpose.msra.mxu0 0
      %1226 = vmatprep.subr.bf16.mxu0 0
      %1227 = vmatpush1.bf16.xpose.msra.mxu0 0
      %1228 = vmatprep.subr.bf16.mxu0 0
      %1229 = vmatpush1.bf16.xpose.msra.mxu0 0
      %1230 = vmatprep.subr.bf16.mxu0 0
      %1231 = vmatpush1.bf16.xpose.msra.mxu0 0
      %1232 = vmatprep.subr.bf16.mxu0 0
      %1233 = vmatpush1.bf16.xpose.msra.mxu0 0
      %1234 = vmatprep.mubr.bf16.mxu0 0
      %1235 = vmatmul.mubr.bf16.gmra.mrb[0].mxu0 %v1135
      %v1236 = vpop.f32.mrb[0].mxu0
      %v1237 = vadd.f32 0.0, %v1236
      %v1238 = vpop.f32.mrb[0].mxu0
      %v1239 = vpop.f32.mrb[0].mxu0
      %v1240 = vpop.f32.mrb[0].mxu0
      %1241 = vdwg.mxu0
      %v1242 = vadd.f32 %v1189, %v1237
      %v1244 = vsel %vm312, %v1133, 0
      %1246 = vmatprep.subr.bf16.mxu0 0
      %1247 = vmatpush1.bf16.xpose.msra.mxu0 %v1138
      %1248 = vmatprep.subr.bf16.mxu0 0
      %1249 = vmatpush1.bf16.xpose.msra.mxu0 %v1141
      %1250 = vmatprep.subr.bf16.mxu0 0
      %1251 = vmatpush1.bf16.xpose.msra.mxu0 %v1144
      %1252 = vmatprep.subr.bf16.mxu0 0
      %1253 = vmatpush1.bf16.xpose.msra.mxu0 %v1147
      %1254 = vmatprep.subr.bf16.mxu0 0
      %1255 = vmatpush1.bf16.xpose.msra.mxu0 0
      %1256 = vmatprep.subr.bf16.mxu0 0
      %1257 = vmatpush1.bf16.xpose.msra.mxu0 0
      %1258 = vmatprep.subr.bf16.mxu0 0
      %1259 = vmatpush1.bf16.xpose.msra.mxu0 0
      %1260 = vmatprep.subr.bf16.mxu0 0
      %1261 = vmatpush1.bf16.xpose.msra.mxu0 0
      %1262 = vmatprep.subr.bf16.mxu0 0
      %1263 = vmatpush1.bf16.xpose.msra.mxu0 0
      %1264 = vmatprep.subr.bf16.mxu0 0
      %1265 = vmatpush1.bf16.xpose.msra.mxu0 0
      %1266 = vmatprep.subr.bf16.mxu0 0
      %1267 = vmatpush1.bf16.xpose.msra.mxu0 0
      %1268 = vmatprep.subr.bf16.mxu0 0
      %1269 = vmatpush1.bf16.xpose.msra.mxu0 0
      %1270 = vmatprep.subr.bf16.mxu0 0
      %1271 = vmatpush1.bf16.xpose.msra.mxu0 0
      %1272 = vmatprep.subr.bf16.mxu0 0
      %1273 = vmatpush1.bf16.xpose.msra.mxu0 0
      %1274 = vmatprep.subr.bf16.mxu0 0
      %1275 = vmatpush1.bf16.xpose.msra.mxu0 0
      %1276 = vmatprep.subr.bf16.mxu0 0
      %1277 = vmatpush1.bf16.xpose.msra.mxu0 0
      %1278 = vmatprep.mubr.bf16.mxu0 0
      %1279 = vmatmul.mubr.bf16.gmra.mrb[0].mxu0 %v1244
      %v1280 = vpop.f32.mrb[0].mxu0
      %v1281 = vadd.f32 0.0, %v1280
      %v1282 = vpop.f32.mrb[0].mxu0
      %v1283 = vpop.f32.mrb[0].mxu0
      %v1284 = vpop.f32.mrb[0].mxu0
      %1285 = vdwg.mxu0
      %v1286 = vadd.f32 %v1242, %v1281
      %v1287 = vld [vmem:[%s319 + $0x2] sm:$0xff]
      %v1288 = vld [vmem:[%s319 + $0x12] sm:$0xff]
      %v1289 = vld [vmem:[%s319 + $0x22] sm:$0xff]
      %v1290 = vld [vmem:[%s319 + $0x32] sm:$0xff]
      %v1291 = vld [vmem:[%s319 + $0x42] sm:$0xff]
      %v1292 = vld [vmem:[%s319 + $0x52] sm:$0xff]
      %v1293 = vld [vmem:[%s319 + $0x62] sm:$0xff]
      %v1294 = vld [vmem:[%s319 + $0x72] sm:$0xff]
      %v1295 = vpack.c.bf16 %v1288, %v1287
      %v1296 = vpack.c.bf16 %v1290, %v1289
      %v1297 = vpack.c.bf16 %v1292, %v1291
      %v1298 = vpack.c.bf16 %v1294, %v1293
      %v1299 = vunpack.c.l.bf16 %v1295
      %v1300 = vunpack.c.h.bf16 %v1295
      %v1301 = vunpack.c.l.bf16 %v1296
      %v1302 = vunpack.c.h.bf16 %v1296
      %v1303 = vunpack.c.l.bf16 %v1297
      %v1304 = vunpack.c.h.bf16 %v1297
      %v1305 = vunpack.c.l.bf16 %v1298
      %v1306 = vunpack.c.h.bf16 %v1298
      %v1307 = vsub.f32 %v1287, %v1299
      %v1308 = vsub.f32 %v1288, %v1300
      %v1309 = vsub.f32 %v1289, %v1301
      %v1310 = vsub.f32 %v1290, %v1302
      %v1311 = vsub.f32 %v1291, %v1303
      %v1312 = vsub.f32 %v1292, %v1304
      %v1313 = vsub.f32 %v1293, %v1305
      %v1314 = vsub.f32 %v1294, %v1306
      %v1315 = vpack.c.bf16 %v1308, %v1307
      %v1316 = vpack.c.bf16 %v1310, %v1309
      %v1317 = vpack.c.bf16 %v1312, %v1311
      %v1318 = vpack.c.bf16 %v1314, %v1313
      %s1319 = scalar_lea.vmem %s1, 20
      %v1320 = vld [vmem:[%s1319] sm:$0xf]
      %s1321 = scalar_lea.vmem %s2, 20
      %v1322 = vld [vmem:[%s1321] sm:$0xf]
      %v1324 = vsel %vm312, %v1320, 0
      %v1327 = vsel %vm312, %v1295, 0
      %v1330 = vsel %vm312, %v1296, 0
      %v1333 = vsel %vm312, %v1297, 0
      %v1336 = vsel %vm312, %v1298, 0
      %1338 = vmatprep.subr.bf16.mxu0 0
      %1339 = vmatpush1.bf16.xpose.msra.mxu0 %v1327
      %1340 = vmatprep.subr.bf16.mxu0 0
      %1341 = vmatpush1.bf16.xpose.msra.mxu0 %v1330
      %1342 = vmatprep.subr.bf16.mxu0 0
      %1343 = vmatpush1.bf16.xpose.msra.mxu0 %v1333
      %1344 = vmatprep.subr.bf16.mxu0 0
      %1345 = vmatpush1.bf16.xpose.msra.mxu0 %v1336
      %1346 = vmatprep.subr.bf16.mxu0 0
      %1347 = vmatpush1.bf16.xpose.msra.mxu0 0
      %1348 = vmatprep.subr.bf16.mxu0 0
      %1349 = vmatpush1.bf16.xpose.msra.mxu0 0
      %1350 = vmatprep.subr.bf16.mxu0 0
      %1351 = vmatpush1.bf16.xpose.msra.mxu0 0
      %1352 = vmatprep.subr.bf16.mxu0 0
      %1353 = vmatpush1.bf16.xpose.msra.mxu0 0
      %1354 = vmatprep.subr.bf16.mxu0 0
      %1355 = vmatpush1.bf16.xpose.msra.mxu0 0
      %1356 = vmatprep.subr.bf16.mxu0 0
      %1357 = vmatpush1.bf16.xpose.msra.mxu0 0
      %1358 = vmatprep.subr.bf16.mxu0 0
      %1359 = vmatpush1.bf16.xpose.msra.mxu0 0
      %1360 = vmatprep.subr.bf16.mxu0 0
      %1361 = vmatpush1.bf16.xpose.msra.mxu0 0
      %1362 = vmatprep.subr.bf16.mxu0 0
      %1363 = vmatpush1.bf16.xpose.msra.mxu0 0
      %1364 = vmatprep.subr.bf16.mxu0 0
      %1365 = vmatpush1.bf16.xpose.msra.mxu0 0
      %1366 = vmatprep.subr.bf16.mxu0 0
      %1367 = vmatpush1.bf16.xpose.msra.mxu0 0
      %1368 = vmatprep.subr.bf16.mxu0 0
      %1369 = vmatpush1.bf16.xpose.msra.mxu0 0
      %1370 = vmatprep.mubr.bf16.mxu0 0
      %1371 = vmatmul.mubr.bf16.gmra.mrb[0].mxu0 %v1324
      %v1372 = vpop.f32.mrb[0].mxu0
      %v1373 = vadd.f32 0.0, %v1372
      %v1374 = vpop.f32.mrb[0].mxu0
      %v1375 = vpop.f32.mrb[0].mxu0
      %v1376 = vpop.f32.mrb[0].mxu0
      %1377 = vdwg.mxu0
      %v1378 = vadd.f32 %v1286, %v1373
      %v1380 = vsel %vm312, %v1315, 0
      %v1383 = vsel %vm312, %v1316, 0
      %v1386 = vsel %vm312, %v1317, 0
      %v1389 = vsel %vm312, %v1318, 0
      %1391 = vmatprep.subr.bf16.mxu0 0
      %1392 = vmatpush1.bf16.xpose.msra.mxu0 %v1380
      %1393 = vmatprep.subr.bf16.mxu0 0
      %1394 = vmatpush1.bf16.xpose.msra.mxu0 %v1383
      %1395 = vmatprep.subr.bf16.mxu0 0
      %1396 = vmatpush1.bf16.xpose.msra.mxu0 %v1386
      %1397 = vmatprep.subr.bf16.mxu0 0
      %1398 = vmatpush1.bf16.xpose.msra.mxu0 %v1389
      %1399 = vmatprep.subr.bf16.mxu0 0
      %1400 = vmatpush1.bf16.xpose.msra.mxu0 0
      %1401 = vmatprep.subr.bf16.mxu0 0
      %1402 = vmatpush1.bf16.xpose.msra.mxu0 0
      %1403 = vmatprep.subr.bf16.mxu0 0
      %1404 = vmatpush1.bf16.xpose.msra.mxu0 0
      %1405 = vmatprep.subr.bf16.mxu0 0
      %1406 = vmatpush1.bf16.xpose.msra.mxu0 0
      %1407 = vmatprep.subr.bf16.mxu0 0
      %1408 = vmatpush1.bf16.xpose.msra.mxu0 0
      %1409 = vmatprep.subr.bf16.mxu0 0
      %1410 = vmatpush1.bf16.xpose.msra.mxu0 0
      %1411 = vmatprep.subr.bf16.mxu0 0
      %1412 = vmatpush1.bf16.xpose.msra.mxu0 0
      %1413 = vmatprep.subr.bf16.mxu0 0
      %1414 = vmatpush1.bf16.xpose.msra.mxu0 0
      %1415 = vmatprep.subr.bf16.mxu0 0
      %1416 = vmatpush1.bf16.xpose.msra.mxu0 0
      %1417 = vmatprep.subr.bf16.mxu0 0
      %1418 = vmatpush1.bf16.xpose.msra.mxu0 0
      %1419 = vmatprep.subr.bf16.mxu0 0
      %1420 = vmatpush1.bf16.xpose.msra.mxu0 0
      %1421 = vmatprep.subr.bf16.mxu0 0
      %1422 = vmatpush1.bf16.xpose.msra.mxu0 0
      %1423 = vmatprep.mubr.bf16.mxu0 0
      %1424 = vmatmul.mubr.bf16.gmra.mrb[0].mxu0 %v1324
      %v1425 = vpop.f32.mrb[0].mxu0
      %v1426 = vadd.f32 0.0, %v1425
      %v1427 = vpop.f32.mrb[0].mxu0
      %v1428 = vpop.f32.mrb[0].mxu0
      %v1429 = vpop.f32.mrb[0].mxu0
      %1430 = vdwg.mxu0
      %v1431 = vadd.f32 %v1378, %v1426
      %v1433 = vsel %vm312, %v1322, 0
      %1435 = vmatprep.subr.bf16.mxu0 0
      %1436 = vmatpush1.bf16.xpose.msra.mxu0 %v1327
      %1437 = vmatprep.subr.bf16.mxu0 0
      %1438 = vmatpush1.bf16.xpose.msra.mxu0 %v1330
      %1439 = vmatprep.subr.bf16.mxu0 0
      %1440 = vmatpush1.bf16.xpose.msra.mxu0 %v1333
      %1441 = vmatprep.subr.bf16.mxu0 0
      %1442 = vmatpush1.bf16.xpose.msra.mxu0 %v1336
      %1443 = vmatprep.subr.bf16.mxu0 0
      %1444 = vmatpush1.bf16.xpose.msra.mxu0 0
      %1445 = vmatprep.subr.bf16.mxu0 0
      %1446 = vmatpush1.bf16.xpose.msra.mxu0 0
      %1447 = vmatprep.subr.bf16.mxu0 0
      %1448 = vmatpush1.bf16.xpose.msra.mxu0 0
      %1449 = vmatprep.subr.bf16.mxu0 0
      %1450 = vmatpush1.bf16.xpose.msra.mxu0 0
      %1451 = vmatprep.subr.bf16.mxu0 0
      %1452 = vmatpush1.bf16.xpose.msra.mxu0 0
      %1453 = vmatprep.subr.bf16.mxu0 0
      %1454 = vmatpush1.bf16.xpose.msra.mxu0 0
      %1455 = vmatprep.subr.bf16.mxu0 0
      %1456 = vmatpush1.bf16.xpose.msra.mxu0 0
      %1457 = vmatprep.subr.bf16.mxu0 0
      %1458 = vmatpush1.bf16.xpose.msra.mxu0 0
      %1459 = vmatprep.subr.bf16.mxu0 0
      %1460 = vmatpush1.bf16.xpose.msra.mxu0 0
      %1461 = vmatprep.subr.bf16.mxu0 0
      %1462 = vmatpush1.bf16.xpose.msra.mxu0 0
      %1463 = vmatprep.subr.bf16.mxu0 0
      %1464 = vmatpush1.bf16.xpose.msra.mxu0 0
      %1465 = vmatprep.subr.bf16.mxu0 0
      %1466 = vmatpush1.bf16.xpose.msra.mxu0 0
      %1467 = vmatprep.mubr.bf16.mxu0 0
      %1468 = vmatmul.mubr.bf16.gmra.mrb[0].mxu0 %v1433
      %v1469 = vpop.f32.mrb[0].mxu0
      %v1470 = vadd.f32 0.0, %v1469
      %v1471 = vpop.f32.mrb[0].mxu0
      %v1472 = vpop.f32.mrb[0].mxu0
      %v1473 = vpop.f32.mrb[0].mxu0
      %1474 = vdwg.mxu0
      %v1475 = vadd.f32 %v1431, %v1470
      %s1476 = scalar_lea.vmem [#allocation2], 32
      %v1477 = vld [vmem:[%s1476] sm:$0xff]
      %v1478 = vld [vmem:[%s1476 + $0x10] sm:$0xff]
      %v1479 = vld [vmem:[%s1476 + $0x20] sm:$0xff]
      %v1480 = vld [vmem:[%s1476 + $0x30] sm:$0xff]
      %v1481 = vld [vmem:[%s1476 + $0x40] sm:$0xff]
      %v1482 = vld [vmem:[%s1476 + $0x50] sm:$0xff]
      %v1483 = vld [vmem:[%s1476 + $0x60] sm:$0xff]
      %v1484 = vld [vmem:[%s1476 + $0x70] sm:$0xff]
      %v1485 = vpack.c.bf16 %v1478, %v1477
      %v1486 = vpack.c.bf16 %v1480, %v1479
      %v1487 = vpack.c.bf16 %v1482, %v1481
      %v1488 = vpack.c.bf16 %v1484, %v1483
      %v1489 = vunpack.c.l.bf16 %v1485
      %v1490 = vunpack.c.h.bf16 %v1485
      %v1491 = vunpack.c.l.bf16 %v1486
      %v1492 = vunpack.c.h.bf16 %v1486
      %v1493 = vunpack.c.l.bf16 %v1487
      %v1494 = vunpack.c.h.bf16 %v1487
      %v1495 = vunpack.c.l.bf16 %v1488
      %v1496 = vunpack.c.h.bf16 %v1488
      %v1497 = vsub.f32 %v1477, %v1489
      %v1498 = vsub.f32 %v1478, %v1490
      %v1499 = vsub.f32 %v1479, %v1491
      %v1500 = vsub.f32 %v1480, %v1492
      %v1501 = vsub.f32 %v1481, %v1493
      %v1502 = vsub.f32 %v1482, %v1494
      %v1503 = vsub.f32 %v1483, %v1495
      %v1504 = vsub.f32 %v1484, %v1496
      %v1505 = vpack.c.bf16 %v1498, %v1497
      %v1506 = vpack.c.bf16 %v1500, %v1499
      %v1507 = vpack.c.bf16 %v1502, %v1501
      %v1508 = vpack.c.bf16 %v1504, %v1503
      %s1509 = scalar_lea.vmem %s1, 24
      %v1510 = vld [vmem:[%s1509] sm:$0xf]
      %s1511 = scalar_lea.vmem %s2, 24
      %v1512 = vld [vmem:[%s1511] sm:$0xf]
      %v1514 = vsel %vm312, %v1510, 0
      %v1517 = vsel %vm312, %v1485, 0
      %v1520 = vsel %vm312, %v1486, 0
      %v1523 = vsel %vm312, %v1487, 0
      %v1526 = vsel %vm312, %v1488, 0
      %1528 = vmatprep.subr.bf16.mxu0 0
      %1529 = vmatpush1.bf16.xpose.msra.mxu0 %v1517
      %1530 = vmatprep.subr.bf16.mxu0 0
      %1531 = vmatpush1.bf16.xpose.msra.mxu0 %v1520
      %1532 = vmatprep.subr.bf16.mxu0 0
      %1533 = vmatpush1.bf16.xpose.msra.mxu0 %v1523
      %1534 = vmatprep.subr.bf16.mxu0 0
      %1535 = vmatpush1.bf16.xpose.msra.mxu0 %v1526
      %1536 = vmatprep.subr.bf16.mxu0 0
      %1537 = vmatpush1.bf16.xpose.msra.mxu0 0
      %1538 = vmatprep.subr.bf16.mxu0 0
      %1539 = vmatpush1.bf16.xpose.msra.mxu0 0
      %1540 = vmatprep.subr.bf16.mxu0 0
      %1541 = vmatpush1.bf16.xpose.msra.mxu0 0
      %1542 = vmatprep.subr.bf16.mxu0 0
      %1543 = vmatpush1.bf16.xpose.msra.mxu0 0
      %1544 = vmatprep.subr.bf16.mxu0 0
      %1545 = vmatpush1.bf16.xpose.msra.mxu0 0
      %1546 = vmatprep.subr.bf16.mxu0 0
      %1547 = vmatpush1.bf16.xpose.msra.mxu0 0
      %1548 = vmatprep.subr.bf16.mxu0 0
      %1549 = vmatpush1.bf16.xpose.msra.mxu0 0
      %1550 = vmatprep.subr.bf16.mxu0 0
      %1551 = vmatpush1.bf16.xpose.msra.mxu0 0
      %1552 = vmatprep.subr.bf16.mxu0 0
      %1553 = vmatpush1.bf16.xpose.msra.mxu0 0
      %1554 = vmatprep.subr.bf16.mxu0 0
      %1555 = vmatpush1.bf16.xpose.msra.mxu0 0
      %1556 = vmatprep.subr.bf16.mxu0 0
      %1557 = vmatpush1.bf16.xpose.msra.mxu0 0
      %1558 = vmatprep.subr.bf16.mxu0 0
      %1559 = vmatpush1.bf16.xpose.msra.mxu0 0
      %1560 = vmatprep.mubr.bf16.mxu0 0
      %1561 = vmatmul.mubr.bf16.gmra.mrb[0].mxu0 %v1514
      %v1562 = vpop.f32.mrb[0].mxu0
      %v1563 = vadd.f32 0.0, %v1562
      %v1564 = vpop.f32.mrb[0].mxu0
      %v1565 = vpop.f32.mrb[0].mxu0
      %v1566 = vpop.f32.mrb[0].mxu0
      %1567 = vdwg.mxu0
      %v1568 = vadd.f32 %v1475, %v1563
      %v1570 = vsel %vm312, %v1505, 0
      %v1573 = vsel %vm312, %v1506, 0
      %v1576 = vsel %vm312, %v1507, 0
      %v1579 = vsel %vm312, %v1508, 0
      %1581 = vmatprep.subr.bf16.mxu0 0
      %1582 = vmatpush1.bf16.xpose.msra.mxu0 %v1570
      %1583 = vmatprep.subr.bf16.mxu0 0
      %1584 = vmatpush1.bf16.xpose.msra.mxu0 %v1573
      %1585 = vmatprep.subr.bf16.mxu0 0
      %1586 = vmatpush1.bf16.xpose.msra.mxu0 %v1576
      %1587 = vmatprep.subr.bf16.mxu0 0
      %1588 = vmatpush1.bf16.xpose.msra.mxu0 %v1579
      %1589 = vmatprep.subr.bf16.mxu0 0
      %1590 = vmatpush1.bf16.xpose.msra.mxu0 0
      %1591 = vmatprep.subr.bf16.mxu0 0
      %1592 = vmatpush1.bf16.xpose.msra.mxu0 0
      %1593 = vmatprep.subr.bf16.mxu0 0
      %1594 = vmatpush1.bf16.xpose.msra.mxu0 0
      %1595 = vmatprep.subr.bf16.mxu0 0
      %1596 = vmatpush1.bf16.xpose.msra.mxu0 0
      %1597 = vmatprep.subr.bf16.mxu0 0
      %1598 = vmatpush1.bf16.xpose.msra.mxu0 0
      %1599 = vmatprep.subr.bf16.mxu0 0
      %1600 = vmatpush1.bf16.xpose.msra.mxu0 0
      %1601 = vmatprep.subr.bf16.mxu0 0
      %1602 = vmatpush1.bf16.xpose.msra.mxu0 0
      %1603 = vmatprep.subr.bf16.mxu0 0
      %1604 = vmatpush1.bf16.xpose.msra.mxu0 0
      %1605 = vmatprep.subr.bf16.mxu0 0
      %1606 = vmatpush1.bf16.xpose.msra.mxu0 0
      %1607 = vmatprep.subr.bf16.mxu0 0
      %1608 = vmatpush1.bf16.xpose.msra.mxu0 0
      %1609 = vmatprep.subr.bf16.mxu0 0
      %1610 = vmatpush1.bf16.xpose.msra.mxu0 0
      %1611 = vmatprep.subr.bf16.mxu0 0
      %1612 = vmatpush1.bf16.xpose.msra.mxu0 0
      %1613 = vmatprep.mubr.bf16.mxu0 0
      %1614 = vmatmul.mubr.bf16.gmra.mrb[0].mxu0 %v1514
      %v1615 = vpop.f32.mrb[0].mxu0
      %v1616 = vadd.f32 0.0, %v1615
      %v1617 = vpop.f32.mrb[0].mxu0
      %v1618 = vpop.f32.mrb[0].mxu0
      %v1619 = vpop.f32.mrb[0].mxu0
      %1620 = vdwg.mxu0
      %v1621 = vadd.f32 %v1568, %v1616
      %v1623 = vsel %vm312, %v1512, 0
      %1625 = vmatprep.subr.bf16.mxu0 0
      %1626 = vmatpush1.bf16.xpose.msra.mxu0 %v1517
      %1627 = vmatprep.subr.bf16.mxu0 0
      %1628 = vmatpush1.bf16.xpose.msra.mxu0 %v1520
      %1629 = vmatprep.subr.bf16.mxu0 0
      %1630 = vmatpush1.bf16.xpose.msra.mxu0 %v1523
      %1631 = vmatprep.subr.bf16.mxu0 0
      %1632 = vmatpush1.bf16.xpose.msra.mxu0 %v1526
      %1633 = vmatprep.subr.bf16.mxu0 0
      %1634 = vmatpush1.bf16.xpose.msra.mxu0 0
      %1635 = vmatprep.subr.bf16.mxu0 0
      %1636 = vmatpush1.bf16.xpose.msra.mxu0 0
      %1637 = vmatprep.subr.bf16.mxu0 0
      %1638 = vmatpush1.bf16.xpose.msra.mxu0 0
      %1639 = vmatprep.subr.bf16.mxu0 0
      %1640 = vmatpush1.bf16.xpose.msra.mxu0 0
      %1641 = vmatprep.subr.bf16.mxu0 0
      %1642 = vmatpush1.bf16.xpose.msra.mxu0 0
      %1643 = vmatprep.subr.bf16.mxu0 0
      %1644 = vmatpush1.bf16.xpose.msra.mxu0 0
      %1645 = vmatprep.subr.bf16.mxu0 0
      %1646 = vmatpush1.bf16.xpose.msra.mxu0 0
      %1647 = vmatprep.subr.bf16.mxu0 0
      %1648 = vmatpush1.bf16.xpose.msra.mxu0 0
      %1649 = vmatprep.subr.bf16.mxu0 0
      %1650 = vmatpush1.bf16.xpose.msra.mxu0 0
      %1651 = vmatprep.subr.bf16.mxu0 0
      %1652 = vmatpush1.bf16.xpose.msra.mxu0 0
      %1653 = vmatprep.subr.bf16.mxu0 0
      %1654 = vmatpush1.bf16.xpose.msra.mxu0 0
      %1655 = vmatprep.subr.bf16.mxu0 0
      %1656 = vmatpush1.bf16.xpose.msra.mxu0 0
      %1657 = vmatprep.mubr.bf16.mxu0 0
      %1658 = vmatmul.mubr.bf16.gmra.mrb[0].mxu0 %v1623
      %v1659 = vpop.f32.mrb[0].mxu0
      %v1660 = vadd.f32 0.0, %v1659
      %v1661 = vpop.f32.mrb[0].mxu0
      %v1662 = vpop.f32.mrb[0].mxu0
      %v1663 = vpop.f32.mrb[0].mxu0
      %1664 = vdwg.mxu0
      %v1665 = vadd.f32 %v1621, %v1660
      %v1666 = vld [vmem:[%s1476 + $0x1] sm:$0xff]
      %v1667 = vld [vmem:[%s1476 + $0x11] sm:$0xff]
      %v1668 = vld [vmem:[%s1476 + $0x21] sm:$0xff]
      %v1669 = vld [vmem:[%s1476 + $0x31] sm:$0xff]
      %v1670 = vld [vmem:[%s1476 + $0x41] sm:$0xff]
      %v1671 = vld [vmem:[%s1476 + $0x51] sm:$0xff]
      %v1672 = vld [vmem:[%s1476 + $0x61] sm:$0xff]
      %v1673 = vld [vmem:[%s1476 + $0x71] sm:$0xff]
      %v1674 = vpack.c.bf16 %v1667, %v1666
      %v1675 = vpack.c.bf16 %v1669, %v1668
      %v1676 = vpack.c.bf16 %v1671, %v1670
      %v1677 = vpack.c.bf16 %v1673, %v1672
      %v1678 = vunpack.c.l.bf16 %v1674
      %v1679 = vunpack.c.h.bf16 %v1674
      %v1680 = vunpack.c.l.bf16 %v1675
      %v1681 = vunpack.c.h.bf16 %v1675
      %v1682 = vunpack.c.l.bf16 %v1676
      %v1683 = vunpack.c.h.bf16 %v1676
      %v1684 = vunpack.c.l.bf16 %v1677
      %v1685 = vunpack.c.h.bf16 %v1677
      %v1686 = vsub.f32 %v1666, %v1678
      %v1687 = vsub.f32 %v1667, %v1679
      %v1688 = vsub.f32 %v1668, %v1680
      %v1689 = vsub.f32 %v1669, %v1681
      %v1690 = vsub.f32 %v1670, %v1682
      %v1691 = vsub.f32 %v1671, %v1683
      %v1692 = vsub.f32 %v1672, %v1684
      %v1693 = vsub.f32 %v1673, %v1685
      %v1694 = vpack.c.bf16 %v1687, %v1686
      %v1695 = vpack.c.bf16 %v1689, %v1688
      %v1696 = vpack.c.bf16 %v1691, %v1690
      %v1697 = vpack.c.bf16 %v1693, %v1692
      %s1698 = scalar_lea.vmem %s1, 28
      %v1699 = vld [vmem:[%s1698] sm:$0xf]
      %s1700 = scalar_lea.vmem %s2, 28
      %v1701 = vld [vmem:[%s1700] sm:$0xf]
      %v1703 = vsel %vm312, %v1699, 0
      %v1706 = vsel %vm312, %v1674, 0
      %v1709 = vsel %vm312, %v1675, 0
      %v1712 = vsel %vm312, %v1676, 0
      %v1715 = vsel %vm312, %v1677, 0
      %1717 = vmatprep.subr.bf16.mxu0 0
      %1718 = vmatpush1.bf16.xpose.msra.mxu0 %v1706
      %1719 = vmatprep.subr.bf16.mxu0 0
      %1720 = vmatpush1.bf16.xpose.msra.mxu0 %v1709
      %1721 = vmatprep.subr.bf16.mxu0 0
      %1722 = vmatpush1.bf16.xpose.msra.mxu0 %v1712
      %1723 = vmatprep.subr.bf16.mxu0 0
      %1724 = vmatpush1.bf16.xpose.msra.mxu0 %v1715
      %1725 = vmatprep.subr.bf16.mxu0 0
      %1726 = vmatpush1.bf16.xpose.msra.mxu0 0
      %1727 = vmatprep.subr.bf16.mxu0 0
      %1728 = vmatpush1.bf16.xpose.msra.mxu0 0
      %1729 = vmatprep.subr.bf16.mxu0 0
      %1730 = vmatpush1.bf16.xpose.msra.mxu0 0
      %1731 = vmatprep.subr.bf16.mxu0 0
      %1732 = vmatpush1.bf16.xpose.msra.mxu0 0
      %1733 = vmatprep.subr.bf16.mxu0 0
      %1734 = vmatpush1.bf16.xpose.msra.mxu0 0
      %1735 = vmatprep.subr.bf16.mxu0 0
      %1736 = vmatpush1.bf16.xpose.msra.mxu0 0
      %1737 = vmatprep.subr.bf16.mxu0 0
      %1738 = vmatpush1.bf16.xpose.msra.mxu0 0
      %1739 = vmatprep.subr.bf16.mxu0 0
      %1740 = vmatpush1.bf16.xpose.msra.mxu0 0
      %1741 = vmatprep.subr.bf16.mxu0 0
      %1742 = vmatpush1.bf16.xpose.msra.mxu0 0
      %1743 = vmatprep.subr.bf16.mxu0 0
      %1744 = vmatpush1.bf16.xpose.msra.mxu0 0
      %1745 = vmatprep.subr.bf16.mxu0 0
      %1746 = vmatpush1.bf16.xpose.msra.mxu0 0
      %1747 = vmatprep.subr.bf16.mxu0 0
      %1748 = vmatpush1.bf16.xpose.msra.mxu0 0
      %1749 = vmatprep.mubr.bf16.mxu0 0
      %1750 = vmatmul.mubr.bf16.gmra.mrb[0].mxu0 %v1703
      %v1751 = vpop.f32.mrb[0].mxu0
      %v1752 = vadd.f32 0.0, %v1751
      %v1753 = vpop.f32.mrb[0].mxu0
      %v1754 = vpop.f32.mrb[0].mxu0
      %v1755 = vpop.f32.mrb[0].mxu0
      %1756 = vdwg.mxu0
      %v1757 = vadd.f32 %v1665, %v1752
      %v1759 = vsel %vm312, %v1694, 0
      %v1762 = vsel %vm312, %v1695, 0
      %v1765 = vsel %vm312, %v1696, 0
      %v1768 = vsel %vm312, %v1697, 0
      %1770 = vmatprep.subr.bf16.mxu0 0
      %1771 = vmatpush1.bf16.xpose.msra.mxu0 %v1759
      %1772 = vmatprep.subr.bf16.mxu0 0
      %1773 = vmatpush1.bf16.xpose.msra.mxu0 %v1762
      %1774 = vmatprep.subr.bf16.mxu0 0
      %1775 = vmatpush1.bf16.xpose.msra.mxu0 %v1765
      %1776 = vmatprep.subr.bf16.mxu0 0
      %1777 = vmatpush1.bf16.xpose.msra.mxu0 %v1768
      %1778 = vmatprep.subr.bf16.mxu0 0
      %1779 = vmatpush1.bf16.xpose.msra.mxu0 0
      %1780 = vmatprep.subr.bf16.mxu0 0
      %1781 = vmatpush1.bf16.xpose.msra.mxu0 0
      %1782 = vmatprep.subr.bf16.mxu0 0
      %1783 = vmatpush1.bf16.xpose.msra.mxu0 0
      %1784 = vmatprep.subr.bf16.mxu0 0
      %1785 = vmatpush1.bf16.xpose.msra.mxu0 0
      %1786 = vmatprep.subr.bf16.mxu0 0
      %1787 = vmatpush1.bf16.xpose.msra.mxu0 0
      %1788 = vmatprep.subr.bf16.mxu0 0
      %1789 = vmatpush1.bf16.xpose.msra.mxu0 0
      %1790 = vmatprep.subr.bf16.mxu0 0
      %1791 = vmatpush1.bf16.xpose.msra.mxu0 0
      %1792 = vmatprep.subr.bf16.mxu0 0
      %1793 = vmatpush1.bf16.xpose.msra.mxu0 0
      %1794 = vmatprep.subr.bf16.mxu0 0
      %1795 = vmatpush1.bf16.xpose.msra.mxu0 0
      %1796 = vmatprep.subr.bf16.mxu0 0
      %1797 = vmatpush1.bf16.xpose.msra.mxu0 0
      %1798 = vmatprep.subr.bf16.mxu0 0
      %1799 = vmatpush1.bf16.xpose.msra.mxu0 0
      %1800 = vmatprep.subr.bf16.mxu0 0
      %1801 = vmatpush1.bf16.xpose.msra.mxu0 0
      %1802 = vmatprep.mubr.bf16.mxu0 0
      %1803 = vmatmul.mubr.bf16.gmra.mrb[0].mxu0 %v1703
      %v1804 = vpop.f32.mrb[0].mxu0
      %v1805 = vadd.f32 0.0, %v1804
      %v1806 = vpop.f32.mrb[0].mxu0
      %v1807 = vpop.f32.mrb[0].mxu0
      %v1808 = vpop.f32.mrb[0].mxu0
      %1809 = vdwg.mxu0
      %v1810 = vadd.f32 %v1757, %v1805
      %v1812 = vsel %vm312, %v1701, 0
      %1814 = vmatprep.subr.bf16.mxu0 0
      %1815 = vmatpush1.bf16.xpose.msra.mxu0 %v1706
      %1816 = vmatprep.subr.bf16.mxu0 0
      %1817 = vmatpush1.bf16.xpose.msra.mxu0 %v1709
      %1818 = vmatprep.subr.bf16.mxu0 0
      %1819 = vmatpush1.bf16.xpose.msra.mxu0 %v1712
      %1820 = vmatprep.subr.bf16.mxu0 0
      %1821 = vmatpush1.bf16.xpose.msra.mxu0 %v1715
      %1822 = vmatprep.subr.bf16.mxu0 0
      %1823 = vmatpush1.bf16.xpose.msra.mxu0 0
      %1824 = vmatprep.subr.bf16.mxu0 0
      %1825 = vmatpush1.bf16.xpose.msra.mxu0 0
      %1826 = vmatprep.subr.bf16.mxu0 0
      %1827 = vmatpush1.bf16.xpose.msra.mxu0 0
      %1828 = vmatprep.subr.bf16.mxu0 0
      %1829 = vmatpush1.bf16.xpose.msra.mxu0 0
      %1830 = vmatprep.subr.bf16.mxu0 0
      %1831 = vmatpush1.bf16.xpose.msra.mxu0 0
      %1832 = vmatprep.subr.bf16.mxu0 0
      %1833 = vmatpush1.bf16.xpose.msra.mxu0 0
      %1834 = vmatprep.subr.bf16.mxu0 0
      %1835 = vmatpush1.bf16.xpose.msra.mxu0 0
      %1836 = vmatprep.subr.bf16.mxu0 0
      %1837 = vmatpush1.bf16.xpose.msra.mxu0 0
      %1838 = vmatprep.subr.bf16.mxu0 0
      %1839 = vmatpush1.bf16.xpose.msra.mxu0 0
      %1840 = vmatprep.subr.bf16.mxu0 0
      %1841 = vmatpush1.bf16.xpose.msra.mxu0 0
      %1842 = vmatprep.subr.bf16.mxu0 0
      %1843 = vmatpush1.bf16.xpose.msra.mxu0 0
      %1844 = vmatprep.subr.bf16.mxu0 0
      %1845 = vmatpush1.bf16.xpose.msra.mxu0 0
      %1846 = vmatprep.mubr.bf16.mxu0 0
      %1847 = vmatmul.mubr.bf16.gmra.mrb[0].mxu0 %v1812
      %v1848 = vpop.f32.mrb[0].mxu0
      %v1849 = vadd.f32 0.0, %v1848
      %v1850 = vpop.f32.mrb[0].mxu0
      %v1851 = vpop.f32.mrb[0].mxu0
      %v1852 = vpop.f32.mrb[0].mxu0
      %1853 = vdwg.mxu0
      %v1854 = vadd.f32 %v1810, %v1849
      %v1855 = vld [vmem:[%s1476 + $0x2] sm:$0xff]
      %v1856 = vld [vmem:[%s1476 + $0x12] sm:$0xff]
      %v1857 = vld [vmem:[%s1476 + $0x22] sm:$0xff]
      %v1858 = vld [vmem:[%s1476 + $0x32] sm:$0xff]
      %v1859 = vld [vmem:[%s1476 + $0x42] sm:$0xff]
      %v1860 = vld [vmem:[%s1476 + $0x52] sm:$0xff]
      %v1861 = vld [vmem:[%s1476 + $0x62] sm:$0xff]
      %v1862 = vld [vmem:[%s1476 + $0x72] sm:$0xff]
      %v1863 = vpack.c.bf16 %v1856, %v1855
      %v1864 = vpack.c.bf16 %v1858, %v1857
      %v1865 = vpack.c.bf16 %v1860, %v1859
      %v1866 = vpack.c.bf16 %v1862, %v1861
      %v1867 = vunpack.c.l.bf16 %v1863
      %v1868 = vunpack.c.h.bf16 %v1863
      %v1869 = vunpack.c.l.bf16 %v1864
      %v1870 = vunpack.c.h.bf16 %v1864
      %v1871 = vunpack.c.l.bf16 %v1865
      %v1872 = vunpack.c.h.bf16 %v1865
      %v1873 = vunpack.c.l.bf16 %v1866
      %v1874 = vunpack.c.h.bf16 %v1866
      %v1875 = vsub.f32 %v1855, %v1867
      %v1876 = vsub.f32 %v1856, %v1868
      %v1877 = vsub.f32 %v1857, %v1869
      %v1878 = vsub.f32 %v1858, %v1870
      %v1879 = vsub.f32 %v1859, %v1871
      %v1880 = vsub.f32 %v1860, %v1872
      %v1881 = vsub.f32 %v1861, %v1873
      %v1882 = vsub.f32 %v1862, %v1874
      %v1883 = vpack.c.bf16 %v1876, %v1875
      %v1884 = vpack.c.bf16 %v1878, %v1877
      %v1885 = vpack.c.bf16 %v1880, %v1879
      %v1886 = vpack.c.bf16 %v1882, %v1881
      %s1887 = scalar_lea.vmem %s1, 32
      %v1888 = vld [vmem:[%s1887] sm:$0xf]
      %s1889 = scalar_lea.vmem %s2, 32
      %v1890 = vld [vmem:[%s1889] sm:$0xf]
      %v1892 = vsel %vm312, %v1888, 0
      %v1895 = vsel %vm312, %v1863, 0
      %v1898 = vsel %vm312, %v1864, 0
      %v1901 = vsel %vm312, %v1865, 0
      %v1904 = vsel %vm312, %v1866, 0
      %1906 = vmatprep.subr.bf16.mxu0 0
      %1907 = vmatpush1.bf16.xpose.msra.mxu0 %v1895
      %1908 = vmatprep.subr.bf16.mxu0 0
      %1909 = vmatpush1.bf16.xpose.msra.mxu0 %v1898
      %1910 = vmatprep.subr.bf16.mxu0 0
      %1911 = vmatpush1.bf16.xpose.msra.mxu0 %v1901
      %1912 = vmatprep.subr.bf16.mxu0 0
      %1913 = vmatpush1.bf16.xpose.msra.mxu0 %v1904
      %1914 = vmatprep.subr.bf16.mxu0 0
      %1915 = vmatpush1.bf16.xpose.msra.mxu0 0
      %1916 = vmatprep.subr.bf16.mxu0 0
      %1917 = vmatpush1.bf16.xpose.msra.mxu0 0
      %1918 = vmatprep.subr.bf16.mxu0 0
      %1919 = vmatpush1.bf16.xpose.msra.mxu0 0
      %1920 = vmatprep.subr.bf16.mxu0 0
      %1921 = vmatpush1.bf16.xpose.msra.mxu0 0
      %1922 = vmatprep.subr.bf16.mxu0 0
      %1923 = vmatpush1.bf16.xpose.msra.mxu0 0
      %1924 = vmatprep.subr.bf16.mxu0 0
      %1925 = vmatpush1.bf16.xpose.msra.mxu0 0
      %1926 = vmatprep.subr.bf16.mxu0 0
      %1927 = vmatpush1.bf16.xpose.msra.mxu0 0
      %1928 = vmatprep.subr.bf16.mxu0 0
      %1929 = vmatpush1.bf16.xpose.msra.mxu0 0
      %1930 = vmatprep.subr.bf16.mxu0 0
      %1931 = vmatpush1.bf16.xpose.msra.mxu0 0
      %1932 = vmatprep.subr.bf16.mxu0 0
      %1933 = vmatpush1.bf16.xpose.msra.mxu0 0
      %1934 = vmatprep.subr.bf16.mxu0 0
      %1935 = vmatpush1.bf16.xpose.msra.mxu0 0
      %1936 = vmatprep.subr.bf16.mxu0 0
      %1937 = vmatpush1.bf16.xpose.msra.mxu0 0
      %1938 = vmatprep.mubr.bf16.mxu0 0
      %1939 = vmatmul.mubr.bf16.gmra.mrb[0].mxu0 %v1892
      %v1940 = vpop.f32.mrb[0].mxu0
      %v1941 = vadd.f32 0.0, %v1940
      %v1942 = vpop.f32.mrb[0].mxu0
      %v1943 = vpop.f32.mrb[0].mxu0
      %v1944 = vpop.f32.mrb[0].mxu0
      %1945 = vdwg.mxu0
      %v1946 = vadd.f32 %v1854, %v1941
      %v1948 = vsel %vm312, %v1883, 0
      %v1951 = vsel %vm312, %v1884, 0
      %v1954 = vsel %vm312, %v1885, 0
      %v1957 = vsel %vm312, %v1886, 0
      %1959 = vmatprep.subr.bf16.mxu0 0
      %1960 = vmatpush1.bf16.xpose.msra.mxu0 %v1948
      %1961 = vmatprep.subr.bf16.mxu0 0
      %1962 = vmatpush1.bf16.xpose.msra.mxu0 %v1951
      %1963 = vmatprep.subr.bf16.mxu0 0
      %1964 = vmatpush1.bf16.xpose.msra.mxu0 %v1954
      %1965 = vmatprep.subr.bf16.mxu0 0
      %1966 = vmatpush1.bf16.xpose.msra.mxu0 %v1957
      %1967 = vmatprep.subr.bf16.mxu0 0
      %1968 = vmatpush1.bf16.xpose.msra.mxu0 0
      %1969 = vmatprep.subr.bf16.mxu0 0
      %1970 = vmatpush1.bf16.xpose.msra.mxu0 0
      %1971 = vmatprep.subr.bf16.mxu0 0
      %1972 = vmatpush1.bf16.xpose.msra.mxu0 0
      %1973 = vmatprep.subr.bf16.mxu0 0
      %1974 = vmatpush1.bf16.xpose.msra.mxu0 0
      %1975 = vmatprep.subr.bf16.mxu0 0
      %1976 = vmatpush1.bf16.xpose.msra.mxu0 0
      %1977 = vmatprep.subr.bf16.mxu0 0
      %1978 = vmatpush1.bf16.xpose.msra.mxu0 0
      %1979 = vmatprep.subr.bf16.mxu0 0
      %1980 = vmatpush1.bf16.xpose.msra.mxu0 0
      %1981 = vmatprep.subr.bf16.mxu0 0
      %1982 = vmatpush1.bf16.xpose.msra.mxu0 0
      %1983 = vmatprep.subr.bf16.mxu0 0
      %1984 = vmatpush1.bf16.xpose.msra.mxu0 0
      %1985 = vmatprep.subr.bf16.mxu0 0
      %1986 = vmatpush1.bf16.xpose.msra.mxu0 0
      %1987 = vmatprep.subr.bf16.mxu0 0
      %1988 = vmatpush1.bf16.xpose.msra.mxu0 0
      %1989 = vmatprep.subr.bf16.mxu0 0
      %1990 = vmatpush1.bf16.xpose.msra.mxu0 0
      %1991 = vmatprep.mubr.bf16.mxu0 0
      %1992 = vmatmul.mubr.bf16.gmra.mrb[0].mxu0 %v1892
      %v1993 = vpop.f32.mrb[0].mxu0
      %v1994 = vadd.f32 0.0, %v1993
      %v1995 = vpop.f32.mrb[0].mxu0
      %v1996 = vpop.f32.mrb[0].mxu0
      %v1997 = vpop.f32.mrb[0].mxu0
      %1998 = vdwg.mxu0
      %v1999 = vadd.f32 %v1946, %v1994
      %v2001 = vsel %vm312, %v1890, 0
      %2003 = vmatprep.subr.bf16.mxu0 0
      %2004 = vmatpush1.bf16.xpose.msra.mxu0 %v1895
      %2005 = vmatprep.subr.bf16.mxu0 0
      %2006 = vmatpush1.bf16.xpose.msra.mxu0 %v1898
      %2007 = vmatprep.subr.bf16.mxu0 0
      %2008 = vmatpush1.bf16.xpose.msra.mxu0 %v1901
      %2009 = vmatprep.subr.bf16.mxu0 0
      %2010 = vmatpush1.bf16.xpose.msra.mxu0 %v1904
      %2011 = vmatprep.subr.bf16.mxu0 0
      %2012 = vmatpush1.bf16.xpose.msra.mxu0 0
      %2013 = vmatprep.subr.bf16.mxu0 0
      %2014 = vmatpush1.bf16.xpose.msra.mxu0 0
      %2015 = vmatprep.subr.bf16.mxu0 0
      %2016 = vmatpush1.bf16.xpose.msra.mxu0 0
      %2017 = vmatprep.subr.bf16.mxu0 0
      %2018 = vmatpush1.bf16.xpose.msra.mxu0 0
      %2019 = vmatprep.subr.bf16.mxu0 0
      %2020 = vmatpush1.bf16.xpose.msra.mxu0 0
      %2021 = vmatprep.subr.bf16.mxu0 0
      %2022 = vmatpush1.bf16.xpose.msra.mxu0 0
      %2023 = vmatprep.subr.bf16.mxu0 0
      %2024 = vmatpush1.bf16.xpose.msra.mxu0 0
      %2025 = vmatprep.subr.bf16.mxu0 0
      %2026 = vmatpush1.bf16.xpose.msra.mxu0 0
      %2027 = vmatprep.subr.bf16.mxu0 0
      %2028 = vmatpush1.bf16.xpose.msra.mxu0 0
      %2029 = vmatprep.subr.bf16.mxu0 0
      %2030 = vmatpush1.bf16.xpose.msra.mxu0 0
      %2031 = vmatprep.subr.bf16.mxu0 0
      %2032 = vmatpush1.bf16.xpose.msra.mxu0 0
      %2033 = vmatprep.subr.bf16.mxu0 0
      %2034 = vmatpush1.bf16.xpose.msra.mxu0 0
      %2035 = vmatprep.mubr.bf16.mxu0 0
      %2036 = vmatmul.mubr.bf16.gmra.mrb[0].mxu0 %v2001
      %v2037 = vpop.f32.mrb[0].mxu0
      %v2038 = vadd.f32 0.0, %v2037
      %v2039 = vpop.f32.mrb[0].mxu0
      %v2040 = vpop.f32.mrb[0].mxu0
      %v2041 = vpop.f32.mrb[0].mxu0
      %2042 = vdwg.mxu0
      %v2043 = vadd.f32 %v1999, %v2038
      %vm2044 = vcmask 523264
      %2045 = vst.msk [vmem:[%s202] sm:$0xff] %vm2044, %v2043
      %v2046 = vsel %vm2044, %v2043, 0.0
      %2047 = vadd.xlane.f32.xlu0 %v2046
      %v2048 = vpop.xlane.xlu0 %2047
      %vm2049 = vcmask 7168
      %2050 = vst.msk [vmem:[%s206] sm:$0xff] %vm2049, %v2048
      %v2051 = vmul.f32 %v2043, %v2043
      %v2052 = vsel %vm2044, %v2051, 0.0
      %2053 = vadd.xlane.f32.xlu0 %v2052
      %v2054 = vpop.xlane.xlu0 %2053
      %vm2055 = vcmask 15368
      %2056 = vst.msk [vmem:[%s206] sm:$0xff] %vm2055, %v2054
      %p2057 = scmp.lt.s32.totalorder %s16, 1
      %s2058 = scalar_select %p2057, %s16, 1
      %s2059 = smul.addr %s2058, 8
      %s2060 = scalar_lea.vmem %s3, %s2059
      %p2061 = scmp.lt.s32.totalorder %s16, 1
      %s2062 = scalar_select %p2061, %s16, 1
      %s2063 = smul.addr %s2062, 8
      %s2064 = scalar_lea.vmem %s4, %s2063
      // Predicated region
      $region33: #{down_cbr_forward.2} parent=31 // pred_check
        %p2065 = pneg %p102
      $region34: #{down_cbr_forward.2} parent=31 // pred_check_branch
        %2067 = sbr.rel (%p2065) target = $region36
      $region35: #{down_cbr_forward.2} parent=31 // pred_region
        _
      $region36: #{down_cbr_forward.2} parent=31 // pred_fallthru
        _
      // Predicated region
      $region37: #{down_cbr_forward.2} parent=31 // pred_check
        %p2068 = pneg %p128
      $region38: #{down_cbr_forward.2} parent=31 // pred_check_branch
        %2070 = sbr.rel (%p2068) target = $region40
      $region39: #{down_cbr_forward.2} parent=31 // pred_region
        _
      $region40: #{down_cbr_forward.2} parent=31 // pred_fallthru
        _
    $region32: #{down_cbr_forward.2} parent=5 // pred_fallthru
      _
    %p2071 = scmp.le.s32.totalorder 2, %s11
    // Predicated region
    $region41: #{down_cbr_forward.2} parent=5 // pred_check
      %p2072 = pneg %p2071
    $region42: #{down_cbr_forward.2} parent=5 // pred_check_branch
      %2074 = sbr.rel (%p2072) target = $region44
    $region43: #{down_cbr_forward.2} parent=5 // pred_region
      %s2075 = ssub.s32 %s11, 2
      // Predicated region
      $region45: #{down_cbr_forward.2} parent=43 // pred_check
        %p2076 = pneg %p108
      $region46: #{down_cbr_forward.2} parent=43 // pred_check_branch
        %2078 = sbr.rel (%p2076) target = $region48
      $region47: #{down_cbr_forward.2} parent=43 // pred_region
        %p2079 = scmp.lt.s32.totalorder %s17, 1
        %s2080 = scalar_select %p2079, %s17, 1
        %s2081 = smul.addr %s2080, 8
        %s2082 = scalar_lea.vmem %s3, %s2081
      $region48: #{down_cbr_forward.2} parent=43 // pred_fallthru
        _
      // Predicated region
      $region49: #{down_cbr_forward.2} parent=43 // pred_check
        %p2083 = pneg %p134
      $region50: #{down_cbr_forward.2} parent=43 // pred_check_branch
        %2085 = sbr.rel (%p2083) target = $region52
      $region51: #{down_cbr_forward.2} parent=43 // pred_region
        %p2086 = scmp.lt.s32.totalorder %s17, 1
        %s2087 = scalar_select %p2086, %s17, 1
        %s2088 = smul.addr %s2087, 8
        %s2089 = scalar_lea.vmem %s4, %s2088
      $region52: #{down_cbr_forward.2} parent=43 // pred_fallthru
        _
    $region44: #{down_cbr_forward.2} parent=5 // pred_fallthru
      _
  $region6: #{down_cbr_forward.2} parent=0 // loop_footer
    %s15 = sadd.s32 1, %s11
  $region7: #{down_cbr_forward.2} parent=0 // loop_footer_branch
    %10 = sbr.rel target = $region3
  $region8: #{down_cbr_forward.2} parent=0 // loop_exit
    _

</llo_original>
